<compile_context>
chip_gen: v5e
topology: v5e:2x2
jax: 0.10.0
libtpu: 0.0.40
codegen_flags: <defaults>
</compile_context>

<pallas_src>
import functools

import numpy as np
import jax
import jax.numpy as jnp
from jax import lax
from jax.experimental import pallas as pl
from jax.experimental.pallas import tpu as pltpu


def _elu_plus_one(z):
    # Reference-side helper: torch.nn.functional.elu(z) + 1.0.
    return jnp.where(z > 0, z, jnp.exp(jnp.minimum(z, 0.0)) - 1.0) + 1.0


def _linear_attention_kernel(x_ref, wf_ref, bias_ref, wpe_ref, bpe_ref,
                             mask_ref, hm_ref, o_ref, *, width, cg):
    c, n = x_ref.shape
    grp = pl.program_id(1)
    start = pl.multiple_of(grp * cg, 8)

    x = x_ref[...]                                     # (C, N) f32
    xg = x_ref[pl.ds(start, cg), :]                    # (Cg, N) f32 — v / pe channels

    # ---- fused grouped 1x1 conv -> [zq; zk] for this head group (bf16 MXU) ----
    z = jnp.dot(wf_ref[...], x.astype(jnp.bfloat16),
                preferred_element_type=jnp.float32) + bias_ref[...]   # (2Cg, N)
    qk = jnp.where(z > 0, z + 1.0, jnp.exp(jnp.minimum(z, 0.0)))      # elu(z) + 1
    q = qk[:cg, :]                                     # (Cg, N)
    k = qk[cg:, :]                                     # (Cg, N)

    # ---- depthwise 3x3 "pe" conv: 8 XLU lane rolls + boundary masks ----------
    contribs = []
    tap = 0
    for di in (-1, 0, 1):
        for dj in (-1, 0, 1):
            if di == 0 and dj == 0:
                contribs.append(wpe_ref[tap] * xg)     # centre tap: no roll, no mask
            else:
                off = di * width + dj                  # flat-index offset of the tap
                shifted = pltpu.roll(xg, shift=(-off) % n, axis=1)   # shifted[p]=x[p+off]
                contribs.append((wpe_ref[tap] * shifted) * mask_ref[tap])
            tap += 1
    # pairwise tree reduction of the 9 contributions (ILP across VALU slots)
    while len(contribs) > 1:
        nxt = [contribs[i] + contribs[i + 1] for i in range(0, len(contribs) - 1, 2)]
        if len(contribs) % 2:
            nxt.append(contribs[-1])
        contribs = nxt
    pe = contribs[0] + bpe_ref[...]

    # ---- linear attention (bf16 MXU operands, f32 accumulation) --------------
    hm = hm_ref[...]                                   # (Cg, Cg) block-diag * s^2
    xg_bf = xg.astype(jnp.bfloat16)
    q_bf = q.astype(jnp.bfloat16)
    k_bf = k.astype(jnp.bfloat16)

    # kvT[e, d] = sum_n v[e, n] * k[d, n]
    kvT = lax.dot_general(xg_bf, k_bf, (((1,), (1,)), ((), ())),
                          preferred_element_type=jnp.float32)         # (Cg, Cg)
    # ksum in lane layout via a tiny ones-LHS matmul: ksum[r, d] = sum_n k[d, n]
    ones_lhs = jnp.ones((8, n), jnp.bfloat16)
    ksum = lax.dot_general(ones_lhs, k_bf, (((1,), (1,)), ((), ())),
                           preferred_element_type=jnp.float32)[:1, :]  # (1, Cg)
    kvT = kvT * hm                                     # off-head blocks -> 0, * s^2
    dmat = hm * ksum                                   # hm[e,d] * kmean[d]  (s^2*ksum)
    lhs = jnp.concatenate([kvT, dmat], axis=0).astype(jnp.bfloat16)    # (2Cg, Cg)
    # one matmul streams q once: rows [:Cg] -> numer, rows [Cg:] -> denom
    nd = lax.dot_general(lhs, q_bf, (((1,), (0,)), ((), ())),
                         preferred_element_type=jnp.float32)           # (2Cg, N)
    numer = nd[:cg, :]
    denom = nd[cg:, :]

    o_ref[...] = numer * pl.reciprocal(denom + 1e-6, approx=True) + pe


def _build_tap_masks(h, w):
    """(9, 1, N) 0/1 masks: mask[t, 0, p] == 1 iff the tap-t neighbour of flat
    position p lies inside the HxW image (zero padding of the 3x3 conv)."""
    n = h * w
    masks = np.zeros((9, 1, n), np.float32)
    i = np.arange(h)[:, None]
    j = np.arange(w)[None, :]
    t = 0
    for di in (-1, 0, 1):
        for dj in (-1, 0, 1):
            valid = (i + di >= 0) & (i + di < h) & (j + dj >= 0) & (j + dj < w)
            masks[t, 0] = valid.reshape(n).astype(np.float32)
            t += 1
    return masks


def linear_attention1(x, wqk, bqk, wpe, bpe, num_heads, num_head_groups=1):
    """Pallas implementation of LinearAttention1.forward (NCHW input/output)."""
    b, c, h, w = x.shape
    n = h * w
    ng = num_head_groups
    assert c % 2 == 0 and c % num_heads == 0, "dim must divide by 2 and num_heads"
    assert num_heads % ng == 0, "num_head_groups must divide num_heads"
    cg = c // ng
    hd = c // num_heads
    assert ng == 1 or cg % 8 == 0, "per-group channel block must be sublane aligned"
    # The roll+mask depthwise conv is only valid for kernel_size=3, padding=1.
    assert wpe.shape == (c, 1, 3, 3), "pe conv must be depthwise 3x3, padding=1"
    # TODO(synk): if H*W is ever not a multiple of 128, pad N (and extend the tap
    # masks / mask q,k pad columns) to keep lane-dense stores; 16x16=256 is fine.

    x_flat = x.reshape(b, c, n).astype(jnp.float32)

    # grouped 1x1 conv weights, fused per head-group into a block-diagonal
    # (2*Cg, C) matrix: rows [:Cg] read x[:C/2] (-> q), rows [Cg:] read x[C/2:] (-> k)
    wq = wqk[:c, :, 0, 0].astype(jnp.float32).reshape(ng, cg, c // 2)
    wk = wqk[c:, :, 0, 0].astype(jnp.float32).reshape(ng, cg, c // 2)
    zeros = jnp.zeros((ng, cg, c // 2), jnp.float32)
    wf = jnp.concatenate([jnp.concatenate([wq, zeros], axis=2),
                          jnp.concatenate([zeros, wk], axis=2)], axis=1)
    wf = wf.astype(jnp.bfloat16)                                     # (G, 2Cg, C)
    bias = jnp.concatenate([bqk[:c].reshape(ng, cg, 1),
                            bqk[c:].reshape(ng, cg, 1)],
                           axis=1).astype(jnp.float32)               # (G, 2Cg, 1)

    # depthwise conv weights flattened to 9 taps, (9, C, 1) for ref[t] loads
    wpe_in = jnp.transpose(wpe[:, 0].reshape(c, 9))[:, :, None].astype(jnp.float32)
    bpe_in = bpe.reshape(c, 1).astype(jnp.float32)
    masks = jnp.asarray(_build_tap_masks(h, w))                      # (9, 1, N)

    # per-group block-diagonal head mask (identical for every group), * s^2 = 1/N
    hpg = num_heads // ng
    hm = np.kron(np.eye(hpg, dtype=np.float32), np.ones((hd, hd), np.float32))
    hm_s2 = jnp.asarray(hm / float(n))                               # (Cg, Cg)

    kernel = functools.partial(_linear_attention_kernel, width=w, cg=cg)

    flops = b * (4 * c * c * n + 6 * c * cg * n + 20 * c * n)
    cost = pl.CostEstimate(flops=int(flops),
                           transcendentals=int(b * 2 * c * n),
                           bytes_accessed=int(4 * (2 * b * c * n + 3 * c * c)))
    vmem_bytes = 4 * (2 * c * n + 16 * cg * n) + (2 << 20)
    vmem_limit = int(min(max(vmem_bytes, 16 << 20), 64 << 20))

    out = pl.pallas_call(
        kernel,
        out_shape=jax.ShapeDtypeStruct((b, c, n), jnp.float32),
        grid=(b, ng),
        in_specs=[
            pl.BlockSpec((None, c, n), lambda i, g: (i, 0, 0)),         # x (per batch)
            pl.BlockSpec((None, 2 * cg, c), lambda i, g: (g, 0, 0)),    # fused qk weight
            pl.BlockSpec((None, 2 * cg, 1), lambda i, g: (g, 0, 0)),    # fused qk bias
            pl.BlockSpec((9, cg, 1), lambda i, g: (0, g, 0)),           # pe tap weights
            pl.BlockSpec((cg, 1), lambda i, g: (g, 0)),                 # pe bias
            pl.BlockSpec((9, 1, n), lambda i, g: (0, 0, 0)),            # boundary masks
            pl.BlockSpec((cg, cg), lambda i, g: (0, 0)),                # head mask * s^2
        ],
        out_specs=pl.BlockSpec((None, cg, n), lambda i, g: (i, g, 0)),
        compiler_params=pltpu.CompilerParams(
            dimension_semantics=("parallel", "parallel"),
            vmem_limit_bytes=vmem_limit),
        cost_estimate=cost,
    )(x_flat, wf, bias, wpe_in, bpe_in, masks, hm_s2)
    return out.reshape(b, c, h, w)


def linear_attention1_reference(x, wqk, bqk, wpe, bpe, num_heads):
    """Pure-JAX reference mirroring the PyTorch forward exactly (f32)."""
    b, c, h, w = x.shape
    n = h * w
    hd = c // num_heads
    s = float(n) ** -0.5
    hi = jax.lax.Precision.HIGHEST

    w2 = wqk[:, :, 0, 0]
    xa = x[:, : c // 2].reshape(b, c // 2, n)
    xb = x[:, c // 2:].reshape(b, c // 2, n)
    zq = jnp.einsum('oc,bcn->bon', w2[:c], xa, precision=hi) + bqk[:c][None, :, None]
    zk = jnp.einsum('oc,bcn->bon', w2[c:], xb, precision=hi) + bqk[c:][None, :, None]
    q = _elu_plus_one(zq).reshape(b, num_heads, hd, n)
    k = _elu_plus_one(zk).reshape(b, num_heads, hd, n)
    v = x.reshape(b, num_heads, hd, n)

    kv = jnp.einsum('bhdn,bhen->bhde', k * s, v * s, precision=hi)
    numer = jnp.einsum('bhdn,bhde->bhne', q, kv, precision=hi)
    denom = jnp.einsum('bhdn,bhd->bhn', q, jnp.mean(k, axis=-1), precision=hi)[..., None]
    attn = numer / (denom + 1e-6)
    attn = jnp.swapaxes(attn, -1, -2).reshape(b, c, h, w)

    pe = jax.lax.conv_general_dilated(
        x, wpe, window_strides=(1, 1), padding=((1, 1), (1, 1)),
        dimension_numbers=('NCHW', 'OIHW', 'NCHW'),
        feature_group_count=c, precision=hi)
    pe = pe + bpe[None, :, None, None]
    return attn + pe


if __name__ == "__main__":
    key = jax.random.PRNGKey(0)
    k1, k2, k3, k4, k5 = jax.random.split(key, 5)

    batch, dim, num_heads, H, W = 2, 32, 4, 16, 16

    # deterministic synthetic parameters (shapes match nn.Conv2d in __init__)
    x = jax.random.normal(k1, (batch, dim, H, W), jnp.float32)
    wqk = jax.random.normal(k2, (2 * dim, dim // 2, 1, 1), jnp.float32) * (dim // 2) ** -0.5
    bqk = jax.random.normal(k3, (2 * dim,), jnp.float32) * 0.1
    wpe = jax.random.normal(k4, (dim, 1, 3, 3), jnp.float32) * (1.0 / 3.0)
    bpe = jax.random.normal(k5, (dim,), jnp.float32) * 0.1

    # num_head_groups=2 exercises the head-group grid axis (2 heads / group).
    out = linear_attention1(x, wqk, bqk, wpe, bpe, num_heads, num_head_groups=2)
    out = jax.block_until_ready(out)

    ref = jax.block_until_ready(
        linear_attention1_reference(x, wqk, bqk, wpe, bpe, num_heads))

    assert out.shape == (batch, dim, H, W)
    # bf16 MXU operands (f32 accumulation) -> slightly looser tolerance than f32.
    np.testing.assert_allclose(np.asarray(out), np.asarray(ref), rtol=1e-2, atol=1e-2)
    print("KERNEL_OK")
</pallas_src>

<mosaic_0001>
module attributes {stable_mosaic.version = 11 : i64} {
  func.func @_linear_attention_kernel(%arg0: i32, %arg1: i32, %arg2: memref<1x32x256xf32, #tpu.memory_space<vmem>>, %arg3: memref<1x32x32xbf16, #tpu.memory_space<vmem>>, %arg4: memref<1x32x1xf32, #tpu.memory_space<vmem>>, %arg5: memref<9x16x1xf32, #tpu.memory_space<vmem>>, %arg6: memref<16x1xf32, #tpu.memory_space<vmem>>, %arg7: memref<9x1x256xf32, #tpu.memory_space<vmem>>, %arg8: memref<16x16xf32, #tpu.memory_space<vmem>>, %arg9: memref<1x16x256xf32, #tpu.memory_space<vmem>>) attributes {dimension_semantics = [#tpu.dimension_semantics<parallel>, #tpu.dimension_semantics<parallel>], iteration_bounds = array<i64: 2, 2>, scalar_prefetch = 0 : i64, scratch_operands = 0 : i64, tpu.core_type = #tpu.core_type<tc>, window_params = [{transform_indices = @transform_0, window_bounds = array<i64: 1, 32, 256>}, {transform_indices = @transform_1, window_bounds = array<i64: 1, 32, 32>}, {transform_indices = @transform_2, window_bounds = array<i64: 1, 32, 1>}, {transform_indices = @transform_3, window_bounds = array<i64: 9, 16, 1>}, {transform_indices = @transform_4, window_bounds = array<i64: 16, 1>}, {pipeline_mode = #tpu.pipeline_mode<synchronous>, transform_indices = @transform_5, window_bounds = array<i64: 9, 1, 256>}, {pipeline_mode = #tpu.pipeline_mode<synchronous>, transform_indices = @transform_6, window_bounds = array<i64: 16, 16>}, {transform_indices = @transform_7, window_bounds = array<i64: 1, 16, 256>}]} {
    %c16_i32 = arith.constant 16 : i32
    %0 = arith.muli %arg1, %c16_i32 : i32
    %1 = tpu.assume_multiple %0, 8 : i32
    %c0 = arith.constant 0 : index
    %c0_0 = arith.constant 0 : index
    %c0_1 = arith.constant 0 : index
    %2 = vector.load %arg2[%c0, %c0_0, %c0_1] : memref<1x32x256xf32, #tpu.memory_space<vmem>>, vector<1x32x256xf32>
    %3 = vector.shape_cast %2 : vector<1x32x256xf32> to vector<32x256xf32>
    %c0_2 = arith.constant 0 : index
    %4 = arith.index_cast %1 : i32 to index
    %c0_3 = arith.constant 0 : index
    %5 = vector.load %arg2[%c0_2, %4, %c0_3] : memref<1x32x256xf32, #tpu.memory_space<vmem>>, vector<1x16x256xf32>
    %6 = vector.shape_cast %5 : vector<1x16x256xf32> to vector<16x256xf32>
    %c0_4 = arith.constant 0 : index
    %c0_5 = arith.constant 0 : index
    %c0_6 = arith.constant 0 : index
    %7 = vector.load %arg3[%c0_4, %c0_5, %c0_6] : memref<1x32x32xbf16, #tpu.memory_space<vmem>>, vector<1x32x32xbf16>
    %8 = vector.shape_cast %7 : vector<1x32x32xbf16> to vector<32x32xbf16>
    %9 = arith.truncf %3 : vector<32x256xf32> to vector<32x256xbf16>
    %cst = arith.constant dense<0.000000e+00> : vector<32x256xf32>
    %10 = tpu.matmul %8, %9, %cst {dimension_numbers = #tpu.dot_dimension_numbers<[1], [0], [0], [1], [0, 0, 1, 1], [], []>} : vector<32x32xbf16>, vector<32x256xbf16>, vector<32x256xf32> -> vector<32x256xf32>
    %c0_7 = arith.constant 0 : index
    %c0_8 = arith.constant 0 : index
    %c0_9 = arith.constant 0 : index
    %11 = vector.load %arg4[%c0_7, %c0_8, %c0_9] : memref<1x32x1xf32, #tpu.memory_space<vmem>>, vector<1x32x1xf32>
    %12 = vector.shape_cast %11 : vector<1x32x1xf32> to vector<32x1xf32>
    %13 = vector.broadcast %12 : vector<32x1xf32> to vector<32x256xf32>
    %14 = arith.addf %10, %13 : vector<32x256xf32>
    %cst_10 = arith.constant 0.000000e+00 : f32
    %15 = vector.broadcast %cst_10 : f32 to vector<32x256xf32>
    %16 = arith.cmpf ogt, %14, %15 : vector<32x256xf32>
    %cst_11 = arith.constant 1.000000e+00 : f32
    %17 = vector.broadcast %cst_11 : f32 to vector<32x256xf32>
    %18 = arith.addf %14, %17 : vector<32x256xf32>
    %cst_12 = arith.constant 0.000000e+00 : f32
    %19 = vector.broadcast %cst_12 : f32 to vector<32x256xf32>
    %20 = arith.minimumf %14, %19 : vector<32x256xf32>
    %21 = math.exp %20 : vector<32x256xf32>
    %22 = arith.select %16, %18, %21 : vector<32x256xi1>, vector<32x256xf32>
    %23 = vector.extract_strided_slice %22 {offsets = [0, 0], sizes = [16, 256], strides = [1, 1]} : vector<32x256xf32> to vector<16x256xf32>
    %24 = vector.extract_strided_slice %22 {offsets = [16, 0], sizes = [16, 256], strides = [1, 1]} : vector<32x256xf32> to vector<16x256xf32>
    %c17_i32 = arith.constant 17 : i32
    %25 = tpu.dynamic_rotate %6 by %c17_i32 dim 1 : vector<16x256xf32>, i32 -> vector<16x256xf32>
    %c0_13 = arith.constant 0 : index
    %c0_14 = arith.constant 0 : index
    %c0_15 = arith.constant 0 : index
    %26 = vector.load %arg5[%c0_13, %c0_14, %c0_15] : memref<9x16x1xf32, #tpu.memory_space<vmem>>, vector<1x16x1xf32>
    %27 = vector.shape_cast %26 : vector<1x16x1xf32> to vector<16x1xf32>
    %28 = vector.broadcast %27 : vector<16x1xf32> to vector<16x256xf32>
    %29 = arith.mulf %28, %25 : vector<16x256xf32>
    %c0_16 = arith.constant 0 : index
    %c0_17 = arith.constant 0 : index
    %c0_18 = arith.constant 0 : index
    %30 = vector.load %arg7[%c0_16, %c0_17, %c0_18] : memref<9x1x256xf32, #tpu.memory_space<vmem>>, vector<1x1x256xf32>
    %31 = vector.shape_cast %30 : vector<1x1x256xf32> to vector<1x256xf32>
    %32 = vector.broadcast %31 : vector<1x256xf32> to vector<16x256xf32>
    %33 = arith.mulf %29, %32 : vector<16x256xf32>
    %c16_i32_19 = arith.constant 16 : i32
    %34 = tpu.dynamic_rotate %6 by %c16_i32_19 dim 1 : vector<16x256xf32>, i32 -> vector<16x256xf32>
    %c1 = arith.constant 1 : index
    %c0_20 = arith.constant 0 : index
    %c0_21 = arith.constant 0 : index
    %35 = vector.load %arg5[%c1, %c0_20, %c0_21] : memref<9x16x1xf32, #tpu.memory_space<vmem>>, vector<1x16x1xf32>
    %36 = vector.shape_cast %35 : vector<1x16x1xf32> to vector<16x1xf32>
    %37 = vector.broadcast %36 : vector<16x1xf32> to vector<16x256xf32>
    %38 = arith.mulf %37, %34 : vector<16x256xf32>
    %c1_22 = arith.constant 1 : index
    %c0_23 = arith.constant 0 : index
    %c0_24 = arith.constant 0 : index
    %39 = vector.load %arg7[%c1_22, %c0_23, %c0_24] : memref<9x1x256xf32, #tpu.memory_space<vmem>>, vector<1x1x256xf32>
    %40 = vector.shape_cast %39 : vector<1x1x256xf32> to vector<1x256xf32>
    %41 = vector.broadcast %40 : vector<1x256xf32> to vector<16x256xf32>
    %42 = arith.mulf %38, %41 : vector<16x256xf32>
    %c15_i32 = arith.constant 15 : i32
    %43 = tpu.dynamic_rotate %6 by %c15_i32 dim 1 : vector<16x256xf32>, i32 -> vector<16x256xf32>
    %c2 = arith.constant 2 : index
    %c0_25 = arith.constant 0 : index
    %c0_26 = arith.constant 0 : index
    %44 = vector.load %arg5[%c2, %c0_25, %c0_26] : memref<9x16x1xf32, #tpu.memory_space<vmem>>, vector<1x16x1xf32>
    %45 = vector.shape_cast %44 : vector<1x16x1xf32> to vector<16x1xf32>
    %46 = vector.broadcast %45 : vector<16x1xf32> to vector<16x256xf32>
    %47 = arith.mulf %46, %43 : vector<16x256xf32>
    %c2_27 = arith.constant 2 : index
    %c0_28 = arith.constant 0 : index
    %c0_29 = arith.constant 0 : index
    %48 = vector.load %arg7[%c2_27, %c0_28, %c0_29] : memref<9x1x256xf32, #tpu.memory_space<vmem>>, vector<1x1x256xf32>
    %49 = vector.shape_cast %48 : vector<1x1x256xf32> to vector<1x256xf32>
    %50 = vector.broadcast %49 : vector<1x256xf32> to vector<16x256xf32>
    %51 = arith.mulf %47, %50 : vector<16x256xf32>
    %c1_i32 = arith.constant 1 : i32
    %52 = tpu.dynamic_rotate %6 by %c1_i32 dim 1 : vector<16x256xf32>, i32 -> vector<16x256xf32>
    %c3 = arith.constant 3 : index
    %c0_30 = arith.constant 0 : index
    %c0_31 = arith.constant 0 : index
    %53 = vector.load %arg5[%c3, %c0_30, %c0_31] : memref<9x16x1xf32, #tpu.memory_space<vmem>>, vector<1x16x1xf32>
    %54 = vector.shape_cast %53 : vector<1x16x1xf32> to vector<16x1xf32>
    %55 = vector.broadcast %54 : vector<16x1xf32> to vector<16x256xf32>
    %56 = arith.mulf %55, %52 : vector<16x256xf32>
    %c3_32 = arith.constant 3 : index
    %c0_33 = arith.constant 0 : index
    %c0_34 = arith.constant 0 : index
    %57 = vector.load %arg7[%c3_32, %c0_33, %c0_34] : memref<9x1x256xf32, #tpu.memory_space<vmem>>, vector<1x1x256xf32>
    %58 = vector.shape_cast %57 : vector<1x1x256xf32> to vector<1x256xf32>
    %59 = vector.broadcast %58 : vector<1x256xf32> to vector<16x256xf32>
    %60 = arith.mulf %56, %59 : vector<16x256xf32>
    %c4 = arith.constant 4 : index
    %c0_35 = arith.constant 0 : index
    %c0_36 = arith.constant 0 : index
    %61 = vector.load %arg5[%c4, %c0_35, %c0_36] : memref<9x16x1xf32, #tpu.memory_space<vmem>>, vector<1x16x1xf32>
    %62 = vector.shape_cast %61 : vector<1x16x1xf32> to vector<16x1xf32>
    %63 = vector.broadcast %62 : vector<16x1xf32> to vector<16x256xf32>
    %64 = arith.mulf %63, %6 : vector<16x256xf32>
    %c255_i32 = arith.constant 255 : i32
    %65 = tpu.dynamic_rotate %6 by %c255_i32 dim 1 : vector<16x256xf32>, i32 -> vector<16x256xf32>
    %c5 = arith.constant 5 : index
    %c0_37 = arith.constant 0 : index
    %c0_38 = arith.constant 0 : index
    %66 = vector.load %arg5[%c5, %c0_37, %c0_38] : memref<9x16x1xf32, #tpu.memory_space<vmem>>, vector<1x16x1xf32>
    %67 = vector.shape_cast %66 : vector<1x16x1xf32> to vector<16x1xf32>
    %68 = vector.broadcast %67 : vector<16x1xf32> to vector<16x256xf32>
    %69 = arith.mulf %68, %65 : vector<16x256xf32>
    %c5_39 = arith.constant 5 : index
    %c0_40 = arith.constant 0 : index
    %c0_41 = arith.constant 0 : index
    %70 = vector.load %arg7[%c5_39, %c0_40, %c0_41] : memref<9x1x256xf32, #tpu.memory_space<vmem>>, vector<1x1x256xf32>
    %71 = vector.shape_cast %70 : vector<1x1x256xf32> to vector<1x256xf32>
    %72 = vector.broadcast %71 : vector<1x256xf32> to vector<16x256xf32>
    %73 = arith.mulf %69, %72 : vector<16x256xf32>
    %c241_i32 = arith.constant 241 : i32
    %74 = tpu.dynamic_rotate %6 by %c241_i32 dim 1 : vector<16x256xf32>, i32 -> vector<16x256xf32>
    %c6 = arith.constant 6 : index
    %c0_42 = arith.constant 0 : index
    %c0_43 = arith.constant 0 : index
    %75 = vector.load %arg5[%c6, %c0_42, %c0_43] : memref<9x16x1xf32, #tpu.memory_space<vmem>>, vector<1x16x1xf32>
    %76 = vector.shape_cast %75 : vector<1x16x1xf32> to vector<16x1xf32>
    %77 = vector.broadcast %76 : vector<16x1xf32> to vector<16x256xf32>
    %78 = arith.mulf %77, %74 : vector<16x256xf32>
    %c6_44 = arith.constant 6 : index
    %c0_45 = arith.constant 0 : index
    %c0_46 = arith.constant 0 : index
    %79 = vector.load %arg7[%c6_44, %c0_45, %c0_46] : memref<9x1x256xf32, #tpu.memory_space<vmem>>, vector<1x1x256xf32>
    %80 = vector.shape_cast %79 : vector<1x1x256xf32> to vector<1x256xf32>
    %81 = vector.broadcast %80 : vector<1x256xf32> to vector<16x256xf32>
    %82 = arith.mulf %78, %81 : vector<16x256xf32>
    %c240_i32 = arith.constant 240 : i32
    %83 = tpu.dynamic_rotate %6 by %c240_i32 dim 1 : vector<16x256xf32>, i32 -> vector<16x256xf32>
    %c7 = arith.constant 7 : index
    %c0_47 = arith.constant 0 : index
    %c0_48 = arith.constant 0 : index
    %84 = vector.load %arg5[%c7, %c0_47, %c0_48] : memref<9x16x1xf32, #tpu.memory_space<vmem>>, vector<1x16x1xf32>
    %85 = vector.shape_cast %84 : vector<1x16x1xf32> to vector<16x1xf32>
    %86 = vector.broadcast %85 : vector<16x1xf32> to vector<16x256xf32>
    %87 = arith.mulf %86, %83 : vector<16x256xf32>
    %c7_49 = arith.constant 7 : index
    %c0_50 = arith.constant 0 : index
    %c0_51 = arith.constant 0 : index
    %88 = vector.load %arg7[%c7_49, %c0_50, %c0_51] : memref<9x1x256xf32, #tpu.memory_space<vmem>>, vector<1x1x256xf32>
    %89 = vector.shape_cast %88 : vector<1x1x256xf32> to vector<1x256xf32>
    %90 = vector.broadcast %89 : vector<1x256xf32> to vector<16x256xf32>
    %91 = arith.mulf %87, %90 : vector<16x256xf32>
    %c239_i32 = arith.constant 239 : i32
    %92 = tpu.dynamic_rotate %6 by %c239_i32 dim 1 : vector<16x256xf32>, i32 -> vector<16x256xf32>
    %c8 = arith.constant 8 : index
    %c0_52 = arith.constant 0 : index
    %c0_53 = arith.constant 0 : index
    %93 = vector.load %arg5[%c8, %c0_52, %c0_53] : memref<9x16x1xf32, #tpu.memory_space<vmem>>, vector<1x16x1xf32>
    %94 = vector.shape_cast %93 : vector<1x16x1xf32> to vector<16x1xf32>
    %95 = vector.broadcast %94 : vector<16x1xf32> to vector<16x256xf32>
    %96 = arith.mulf %95, %92 : vector<16x256xf32>
    %c8_54 = arith.constant 8 : index
    %c0_55 = arith.constant 0 : index
    %c0_56 = arith.constant 0 : index
    %97 = vector.load %arg7[%c8_54, %c0_55, %c0_56] : memref<9x1x256xf32, #tpu.memory_space<vmem>>, vector<1x1x256xf32>
    %98 = vector.shape_cast %97 : vector<1x1x256xf32> to vector<1x256xf32>
    %99 = vector.broadcast %98 : vector<1x256xf32> to vector<16x256xf32>
    %100 = arith.mulf %96, %99 : vector<16x256xf32>
    %101 = arith.addf %33, %42 : vector<16x256xf32>
    %102 = arith.addf %51, %60 : vector<16x256xf32>
    %103 = arith.addf %64, %73 : vector<16x256xf32>
    %104 = arith.addf %82, %91 : vector<16x256xf32>
    %105 = arith.addf %101, %102 : vector<16x256xf32>
    %106 = arith.addf %103, %104 : vector<16x256xf32>
    %107 = arith.addf %105, %106 : vector<16x256xf32>
    %108 = arith.addf %107, %100 : vector<16x256xf32>
    %c0_57 = arith.constant 0 : index
    %c0_58 = arith.constant 0 : index
    %109 = vector.load %arg6[%c0_57, %c0_58] : memref<16x1xf32, #tpu.memory_space<vmem>>, vector<16x1xf32>
    %110 = vector.broadcast %109 : vector<16x1xf32> to vector<16x256xf32>
    %111 = arith.addf %108, %110 : vector<16x256xf32>
    %c0_59 = arith.constant 0 : index
    %c0_60 = arith.constant 0 : index
    %112 = vector.load %arg8[%c0_59, %c0_60] : memref<16x16xf32, #tpu.memory_space<vmem>>, vector<16x16xf32>
    %113 = arith.truncf %6 : vector<16x256xf32> to vector<16x256xbf16>
    %114 = arith.truncf %23 : vector<16x256xf32> to vector<16x256xbf16>
    %115 = arith.truncf %24 : vector<16x256xf32> to vector<16x256xbf16>
    %cst_61 = arith.constant dense<0.000000e+00> : vector<16x16xf32>
    %116 = tpu.matmul %113, %115, %cst_61 {dimension_numbers = #tpu.dot_dimension_numbers<[1], [1], [0], [0], [0, 0, 1, 0], [], []>} : vector<16x256xbf16>, vector<16x256xbf16>, vector<16x16xf32> -> vector<16x16xf32>
    %cst_62 = arith.constant 1.000000e+00 : bf16
    %117 = vector.broadcast %cst_62 : bf16 to vector<8x256xbf16>
    %cst_63 = arith.constant dense<0.000000e+00> : vector<8x16xf32>
    %118 = tpu.matmul %117, %115, %cst_63 {dimension_numbers = #tpu.dot_dimension_numbers<[1], [1], [0], [0], [0, 0, 1, 0], [], []>} : vector<8x256xbf16>, vector<16x256xbf16>, vector<8x16xf32> -> vector<8x16xf32>
    %119 = vector.extract_strided_slice %118 {offsets = [0, 0], sizes = [1, 16], strides = [1, 1]} : vector<8x16xf32> to vector<1x16xf32>
    %120 = arith.mulf %116, %112 : vector<16x16xf32>
    %121 = vector.broadcast %119 : vector<1x16xf32> to vector<16x16xf32>
    %122 = arith.mulf %112, %121 : vector<16x16xf32>
    %123 = tpu.concatenate %120, %122 in 0 : vector<16x16xf32>, vector<16x16xf32> -> vector<32x16xf32>
    %124 = arith.truncf %123 : vector<32x16xf32> to vector<32x16xbf16>
    %cst_64 = arith.constant dense<0.000000e+00> : vector<32x256xf32>
    %125 = tpu.matmul %124, %114, %cst_64 {dimension_numbers = #tpu.dot_dimension_numbers<[1], [0], [0], [1], [0, 0, 1, 1], [], []>} : vector<32x16xbf16>, vector<16x256xbf16>, vector<32x256xf32> -> vector<32x256xf32>
    %126 = vector.extract_strided_slice %125 {offsets = [0, 0], sizes = [16, 256], strides = [1, 1]} : vector<32x256xf32> to vector<16x256xf32>
    %127 = vector.extract_strided_slice %125 {offsets = [16, 0], sizes = [16, 256], strides = [1, 1]} : vector<32x256xf32> to vector<16x256xf32>
    %cst_65 = arith.constant 9.99999997E-7 : f32
    %128 = vector.broadcast %cst_65 : f32 to vector<16x256xf32>
    %129 = arith.addf %127, %128 : vector<16x256xf32>
    %130 = tpu.reciprocal %129 {approx = true} : vector<16x256xf32> -> vector<16x256xf32>
    %131 = arith.mulf %126, %130 : vector<16x256xf32>
    %132 = arith.addf %131, %111 : vector<16x256xf32>
    %c0_66 = arith.constant 0 : index
    %c0_67 = arith.constant 0 : index
    %c0_68 = arith.constant 0 : index
    %133 = vector.load %arg9[%c0_66, %c0_67, %c0_68] : memref<1x16x256xf32, #tpu.memory_space<vmem>>, vector<1x16x256xf32>
    %134 = vector.shape_cast %133 : vector<1x16x256xf32> to vector<16x256xf32>
    %135 = vector.shape_cast %132 : vector<16x256xf32> to vector<1x16x256xf32>
    tpu.vector_store %arg9[%c0_66, %c0_67, %c0_68], %135 {strides = array<i32>} : memref<1x16x256xf32, #tpu.memory_space<vmem>>, vector<1x16x256xf32>,
    return
  }
  func.func @transform_0(%arg0: i32, %arg1: i32) -> (i32, i32, i32) {
    %c0_i32 = arith.constant 0 : i32
    %c0_i32_0 = arith.constant 0 : i32
    %c0_i32_1 = arith.constant 0 : i32
    return %arg0, %c0_i32, %c0_i32_0 : i32, i32, i32
  }
  func.func @transform_1(%arg0: i32, %arg1: i32) -> (i32, i32, i32) {
    %c0_i32 = arith.constant 0 : i32
    %c0_i32_0 = arith.constant 0 : i32
    %c0_i32_1 = arith.constant 0 : i32
    return %arg1, %c0_i32, %c0_i32_0 : i32, i32, i32
  }
  func.func @transform_2(%arg0: i32, %arg1: i32) -> (i32, i32, i32) {
    %c0_i32 = arith.constant 0 : i32
    %c0_i32_0 = arith.constant 0 : i32
    %c0_i32_1 = arith.constant 0 : i32
    return %arg1, %c0_i32, %c0_i32_0 : i32, i32, i32
  }
  func.func @transform_3(%arg0: i32, %arg1: i32) -> (i32, i32, i32) {
    %c0_i32 = arith.constant 0 : i32
    %c0_i32_0 = arith.constant 0 : i32
    %c0_i32_1 = arith.constant 0 : i32
    return %c0_i32, %arg1, %c0_i32_0 : i32, i32, i32
  }
  func.func @transform_4(%arg0: i32, %arg1: i32) -> (i32, i32) {
    %c0_i32 = arith.constant 0 : i32
    %c0_i32_0 = arith.constant 0 : i32
    return %arg1, %c0_i32 : i32, i32
  }
  func.func @transform_5(%arg0: i32, %arg1: i32) -> (i32, i32, i32) {
    %c0_i32 = arith.constant 0 : i32
    %c0_i32_0 = arith.constant 0 : i32
    %c0_i32_1 = arith.constant 0 : i32
    %c0_i32_2 = arith.constant 0 : i32
    return %c0_i32, %c0_i32_0, %c0_i32_1 : i32, i32, i32
  }
  func.func @transform_6(%arg0: i32, %arg1: i32) -> (i32, i32) {
    %c0_i32 = arith.constant 0 : i32
    %c0_i32_0 = arith.constant 0 : i32
    %c0_i32_1 = arith.constant 0 : i32
    return %c0_i32, %c0_i32_0 : i32, i32
  }
  func.func @transform_7(%arg0: i32, %arg1: i32) -> (i32, i32, i32) {
    %c0_i32 = arith.constant 0 : i32
    %c0_i32_0 = arith.constant 0 : i32
    return %arg0, %arg1, %c0_i32 : i32, i32, i32
  }
}

</mosaic_0001>

<llo_original>
// kernel: tpu_custom_call.1
$region0: #{tpu_custom_call.1}
  #allocation0 [shape = 'u32[]', space=smem, size = 0x4, offset = 0x4, fixed_abs, tag = 'smem constant byte address 0x4 - core index']
  #allocation1 [shape = 'u32[72,128]{1,0:T(1,128)}', space=vmem, size = 0x9000, scoped, tag = 'internal scratch']
  %s0 = inlined_call_operand.vmem [shape: f32[2,32,256], index: 0, kind: input, shape index: {}]
  %s1 = inlined_call_operand.vmem [shape: bf16[2,32,32], index: 1, kind: input, shape index: {}]
  %s2 = inlined_call_operand.vmem [shape: f32[2,32,1], index: 2, kind: input, shape index: {}]
  %s3 = inlined_call_operand.vmem [shape: f32[9,32,1], index: 3, kind: input, shape index: {}]
  %s4 = inlined_call_operand.vmem [shape: f32[32,1], index: 4, kind: input, shape index: {}]
  %s5 = inlined_call_operand.vmem [shape: f32[9,1,256], index: 5, kind: input, shape index: {}]
  %s6 = inlined_call_operand.vmem [shape: f32[16,16], index: 6, kind: input, shape index: {}]
  %s7 = inlined_call_operand.hbm [shape: f32[2,32,256], index: 7, kind: output, shape index: {}]
  %s8 = sld [smem:[#allocation0]]
  $region99: #{tpu_custom_call.1} parent=0
    _
  %s10 = ssub.s32 1, %s8
  %s11 = scalar_select 0, %s10, %s8
  $region1: #{tpu_custom_call.1} parent=0
    #allocation2 [shape = 'u8[147456]{0}', space=vmem, size = 0x24000, scoped, tag = 'input window, operand 3']
    #allocation3 [shape = 'u8[32768]{0}', space=vmem, size = 0x8000, scoped, tag = 'output window, operand 0']
    #allocation4 [shape = 's32[2]{0}', space=sflag, size = 0x8, scoped, tag = 'scoped memory for tpu_custom_call.1']
    %12 = vsyncpa [#allocation4], 0
    %s13 = scalar_lea.sflag [#allocation4], 1
    %14 = vsyncpa %s13, 0
    loop: start=0, step=1, limit=6
    $region2: #{tpu_custom_call.1} parent=1 // loop_pre_header
      _
    $region3: #{tpu_custom_call.1} parent=1 // loop_header
      %s16 = sphi 0, %s20
      %p17 = scmp.ge.s32.totalorder %s16, 6
      %s23 = sphi 0, %s35
      %s24 = sphi 0, %s31
      %s25 = sphi 0, %s23
      %s26 = sphi 0, %s24
      %s27 = sphi 0, %s25
      %s28 = sphi 0, %s26
      %s38 = sphi 0, %s40
      %s41 = sphi 0, %s38
      %s42 = sphi 0, %s41
      %s58 = sphi 0, %s42
      %s64 = sphi 0, %s66
      %s67 = sphi 0, %s64
      %s68 = sphi 0, %s67
      %s84 = sphi 0, %s68
      %s90 = sphi 0, %s92
      %s93 = sphi 0, %s90
      %s94 = sphi 0, %s93
      %s110 = sphi 0, %s94
      %s116 = sphi 0, %s118
      %s119 = sphi 0, %s116
      %s120 = sphi 0, %s119
      %s136 = sphi 0, %s120
      %s142 = sphi 0, %s144
      %s145 = sphi 0, %s142
      %s146 = sphi 0, %s145
      %s162 = sphi 0, %s146
      %s166 = sphi 0, %s166
      %s168 = sphi 0, %s166
      %s169 = sphi 0, %s168
      %s183 = sphi 0, %s169
      %s187 = sphi 0, %s187
      %s189 = sphi 0, %s187
      %s190 = sphi 0, %s189
      %s204 = sphi 0, %s190
      %s212 = sphi 0, %s214
      %s215 = sphi 0, %s212
      %s216 = sphi 0, %s215
      %s232 = sphi 0, %s216
    $region4: #{tpu_custom_call.1} parent=1 // loop_header_branch
      %19 = sbr.rel (%p17) target = $region8
    $region5: #{tpu_custom_call.1} parent=1 // loop_body
      %s21 = ssub.s32 %s16, 1
      %s22 = ssub.s32 %s16, 2
      %s29 = sadd.s32 1, %s24
      %p30 = scmp.ge.s32.totalorder %s29, 2
      %s31 = scalar_select %p30, 0, %s29
      %s32 = sadd.s32 1, %s23
      %s33 = scalar_select %p30, %s32, %s23
      %p34 = scmp.ge.s32.totalorder %s33, 2
      %s35 = scalar_select %p34, 0, %s33
      %s36 = ssub.s32 %s23, %s35
      %p37 = scmp.eq.s32.totalorder %s36, 0
      %s39 = sadd.s32 %s38, 1
      %s40 = scalar_select %p37, %s38, %s39
      %p43 = pneg %p37
      %p44 = scmp.eq.s32.totalorder %s16, 3
      %p45 = por %p43, %p44
      %p46 = scmp.ne.s32.totalorder %s38, %s41
      %p47 = scmp.eq.s32.totalorder %s16, 0
      %p48 = por %p46, %p47
      %p49 = scmp.ne.s32.totalorder %s38, %s41
      %p50 = scmp.eq.s32.totalorder %s21, 3
      %p51 = por %p49, %p50
      %p52 = scmp.ne.s32.totalorder %s41, %s42
      %p53 = scmp.eq.s32.totalorder %s21, 0
      %p54 = por %p52, %p53
      %p55 = scmp.ne.s32.totalorder %s41, %s42
      %p56 = scmp.eq.s32.totalorder %s22, 3
      %p57 = por %p55, %p56
      %p59 = scmp.ne.s32.totalorder %s42, %s58
      %p60 = scmp.eq.s32.totalorder %s22, 0
      %p61 = por %p59, %p60
      %s62 = ssub.s32 %s24, %s31
      %p63 = scmp.eq.s32.totalorder %s62, 0
      %s65 = sadd.s32 %s64, 1
      %s66 = scalar_select %p63, %s64, %s65
      %p69 = pneg %p63
      %p70 = scmp.eq.s32.totalorder %s16, 3
      %p71 = por %p69, %p70
      %p72 = scmp.ne.s32.totalorder %s64, %s67
      %p73 = scmp.eq.s32.totalorder %s16, 0
      %p74 = por %p72, %p73
      %p75 = scmp.ne.s32.totalorder %s64, %s67
      %p76 = scmp.eq.s32.totalorder %s21, 3
      %p77 = por %p75, %p76
      %p78 = scmp.ne.s32.totalorder %s67, %s68
      %p79 = scmp.eq.s32.totalorder %s21, 0
      %p80 = por %p78, %p79
      %p81 = scmp.ne.s32.totalorder %s67, %s68
      %p82 = scmp.eq.s32.totalorder %s22, 3
      %p83 = por %p81, %p82
      %p85 = scmp.ne.s32.totalorder %s68, %s84
      %p86 = scmp.eq.s32.totalorder %s22, 0
      %p87 = por %p85, %p86
      %s88 = ssub.s32 %s24, %s31
      %p89 = scmp.eq.s32.totalorder %s88, 0
      %s91 = sadd.s32 %s90, 1
      %s92 = scalar_select %p89, %s90, %s91
      %p95 = pneg %p89
      %p96 = scmp.eq.s32.totalorder %s16, 3
      %p97 = por %p95, %p96
      %p98 = scmp.ne.s32.totalorder %s90, %s93
      %p99 = scmp.eq.s32.totalorder %s16, 0
      %p100 = por %p98, %p99
      %p101 = scmp.ne.s32.totalorder %s90, %s93
      %p102 = scmp.eq.s32.totalorder %s21, 3
      %p103 = por %p101, %p102
      %p104 = scmp.ne.s32.totalorder %s93, %s94
      %p105 = scmp.eq.s32.totalorder %s21, 0
      %p106 = por %p104, %p105
      %p107 = scmp.ne.s32.totalorder %s93, %s94
      %p108 = scmp.eq.s32.totalorder %s22, 3
      %p109 = por %p107, %p108
      %p111 = scmp.ne.s32.totalorder %s94, %s110
      %p112 = scmp.eq.s32.totalorder %s22, 0
      %p113 = por %p111, %p112
      %s114 = ssub.s32 %s24, %s31
      %p115 = scmp.eq.s32.totalorder %s114, 0
      %s117 = sadd.s32 %s116, 1
      %s118 = scalar_select %p115, %s116, %s117
      %p121 = pneg %p115
      %p122 = scmp.eq.s32.totalorder %s16, 3
      %p123 = por %p121, %p122
      %p124 = scmp.ne.s32.totalorder %s116, %s119
      %p125 = scmp.eq.s32.totalorder %s16, 0
      %p126 = por %p124, %p125
      %p127 = scmp.ne.s32.totalorder %s116, %s119
      %p128 = scmp.eq.s32.totalorder %s21, 3
      %p129 = por %p127, %p128
      %p130 = scmp.ne.s32.totalorder %s119, %s120
      %p131 = scmp.eq.s32.totalorder %s21, 0
      %p132 = por %p130, %p131
      %p133 = scmp.ne.s32.totalorder %s119, %s120
      %p134 = scmp.eq.s32.totalorder %s22, 3
      %p135 = por %p133, %p134
      %p137 = scmp.ne.s32.totalorder %s120, %s136
      %p138 = scmp.eq.s32.totalorder %s22, 0
      %p139 = por %p137, %p138
      %s140 = ssub.s32 %s24, %s31
      %p141 = scmp.eq.s32.totalorder %s140, 0
      %s143 = sadd.s32 %s142, 1
      %s144 = scalar_select %p141, %s142, %s143
      %p147 = pneg %p141
      %p148 = scmp.eq.s32.totalorder %s16, 3
      %p149 = por %p147, %p148
      %p150 = scmp.ne.s32.totalorder %s142, %s145
      %p151 = scmp.eq.s32.totalorder %s16, 0
      %p152 = por %p150, %p151
      %p153 = scmp.ne.s32.totalorder %s142, %s145
      %p154 = scmp.eq.s32.totalorder %s21, 3
      %p155 = por %p153, %p154
      %p156 = scmp.ne.s32.totalorder %s145, %s146
      %p157 = scmp.eq.s32.totalorder %s21, 0
      %p158 = por %p156, %p157
      %p159 = scmp.ne.s32.totalorder %s145, %s146
      %p160 = scmp.eq.s32.totalorder %s22, 3
      %p161 = por %p159, %p160
      %p163 = scmp.ne.s32.totalorder %s146, %s162
      %p164 = scmp.eq.s32.totalorder %s22, 0
      %p165 = por %p163, %p164
      %s167 = sadd.s32 %s166, 1
      %p170 = scmp.eq.s32.totalorder %s16, 3
      %p171 = scmp.ne.s32.totalorder %s166, %s168
      %p172 = scmp.eq.s32.totalorder %s16, 0
      %p173 = por %p171, %p172
      %p174 = scmp.ne.s32.totalorder %s166, %s168
      %p175 = scmp.eq.s32.totalorder %s21, 3
      %p176 = por %p174, %p175
      %p177 = scmp.ne.s32.totalorder %s168, %s169
      %p178 = scmp.eq.s32.totalorder %s21, 0
      %p179 = por %p177, %p178
      %p180 = scmp.ne.s32.totalorder %s168, %s169
      %p181 = scmp.eq.s32.totalorder %s22, 3
      %p182 = por %p180, %p181
      %p184 = scmp.ne.s32.totalorder %s169, %s183
      %p185 = scmp.eq.s32.totalorder %s22, 0
      %p186 = por %p184, %p185
      %s188 = sadd.s32 %s187, 1
      %p191 = scmp.eq.s32.totalorder %s16, 3
      %p192 = scmp.ne.s32.totalorder %s187, %s189
      %p193 = scmp.eq.s32.totalorder %s16, 0
      %p194 = por %p192, %p193
      %p195 = scmp.ne.s32.totalorder %s187, %s189
      %p196 = scmp.eq.s32.totalorder %s21, 3
      %p197 = por %p195, %p196
      %p198 = scmp.ne.s32.totalorder %s189, %s190
      %p199 = scmp.eq.s32.totalorder %s21, 0
      %p200 = por %p198, %p199
      %p201 = scmp.ne.s32.totalorder %s189, %s190
      %p202 = scmp.eq.s32.totalorder %s22, 3
      %p203 = por %p201, %p202
      %p205 = scmp.ne.s32.totalorder %s190, %s204
      %p206 = scmp.eq.s32.totalorder %s22, 0
      %p207 = por %p205, %p206
      %s208 = ssub.s32 %s23, %s35
      %s209 = ssub.s32 %s24, %s31
      %s210 = sor.u32 %s208, %s209
      %p211 = scmp.eq.s32.totalorder %s210, 0
      %s213 = sadd.s32 %s212, 1
      %s214 = scalar_select %p211, %s212, %s213
      %p217 = pneg %p211
      %p218 = scmp.eq.s32.totalorder %s16, 3
      %p219 = por %p217, %p218
      %p220 = scmp.ne.s32.totalorder %s212, %s215
      %p221 = scmp.eq.s32.totalorder %s16, 0
      %p222 = por %p220, %p221
      %p223 = scmp.ne.s32.totalorder %s212, %s215
      %p224 = scmp.eq.s32.totalorder %s21, 3
      %p225 = por %p223, %p224
      %p226 = scmp.ne.s32.totalorder %s215, %s216
      %p227 = scmp.eq.s32.totalorder %s21, 0
      %p228 = por %p226, %p227
      %p229 = scmp.ne.s32.totalorder %s215, %s216
      %p230 = scmp.eq.s32.totalorder %s22, 3
      %p231 = por %p229, %p230
      %p233 = scmp.ne.s32.totalorder %s216, %s232
      %p234 = scmp.eq.s32.totalorder %s22, 0
      %p235 = por %p233, %p234
      %p236 = scmp.le.s32.totalorder 1, %s16
      %p237 = scmp.lt.s32.totalorder %s16, 5
      %p238 = pnand %p236, %p237
      %p239 = pneg %p238
      // Predicated region
      $region9: #{tpu_custom_call.1} parent=5 // pred_check
        _
      $region10: #{tpu_custom_call.1} parent=5 // pred_check_branch
        %241 = sbr.rel (%p238) target = $region12
      $region11: #{tpu_custom_call.1} parent=5 // pred_region
        %s242 = ssub.s32 %s16, 1
        // Predicated region
        $region13: #{tpu_custom_call.1} parent=11 // pred_check
          %p243 = pneg %p179
        $region14: #{tpu_custom_call.1} parent=11 // pred_check_branch
          %245 = sbr.rel (%p243) target = $region16
        $region15: #{tpu_custom_call.1} parent=11 // pred_region
          _
        $region16: #{tpu_custom_call.1} parent=11 // pred_fallthru
          _
        // Predicated region
        $region17: #{tpu_custom_call.1} parent=11 // pred_check
          %p246 = pneg %p200
        $region18: #{tpu_custom_call.1} parent=11 // pred_check_branch
          %248 = sbr.rel (%p246) target = $region20
        $region19: #{tpu_custom_call.1} parent=11 // pred_region
          _
        $region20: #{tpu_custom_call.1} parent=11 // pred_fallthru
          _
      $region12: #{tpu_custom_call.1} parent=5 // pred_fallthru
        _
      %p249 = scmp.lt.s32.totalorder %s16, 4
      // Predicated region
      $region21: #{tpu_custom_call.1} parent=5 // pred_check
        %p250 = pneg %p249
      $region22: #{tpu_custom_call.1} parent=5 // pred_check_branch
        %252 = sbr.rel (%p250) target = $region24
      $region23: #{tpu_custom_call.1} parent=5 // pred_region
        // Predicated region
        $region25: #{tpu_custom_call.1} parent=23 // pred_check
          %p253 = pneg %p48
        $region26: #{tpu_custom_call.1} parent=23 // pred_check_branch
          %255 = sbr.rel (%p253) target = $region28
        $region27: #{tpu_custom_call.1} parent=23 // pred_region
          %p256 = scmp.lt.s32.totalorder %s23, 1
          %s257 = scalar_select %p256, %s23, 1
          %s258 = smul.addr %s257, 8
          %s259 = smul.addr %s258, 8
          %s260 = scalar_lea.vmem %s0, %s259
        $region28: #{tpu_custom_call.1} parent=23 // pred_fallthru
          _
        // Predicated region
        $region29: #{tpu_custom_call.1} parent=23 // pred_check
          %p261 = pneg %p74
        $region30: #{tpu_custom_call.1} parent=23 // pred_check_branch
          %263 = sbr.rel (%p261) target = $region32
        $region31: #{tpu_custom_call.1} parent=23 // pred_region
          %p264 = scmp.lt.s32.totalorder %s24, 1
          %s265 = scalar_select %p264, %s24, 1
          %s266 = smul.addr %s265, 4
          %s267 = smul.addr %s266, 4
          %s268 = scalar_lea.vmem %s1, %s267
        $region32: #{tpu_custom_call.1} parent=23 // pred_fallthru
          _
        // Predicated region
        $region33: #{tpu_custom_call.1} parent=23 // pred_check
          %p269 = pneg %p100
        $region34: #{tpu_custom_call.1} parent=23 // pred_check_branch
          %271 = sbr.rel (%p269) target = $region36
        $region35: #{tpu_custom_call.1} parent=23 // pred_region
          %p272 = scmp.lt.s32.totalorder %s24, 1
          %s273 = scalar_select %p272, %s24, 1
          %s274 = smul.addr %s273, 4
          %s275 = smul.addr %s274, 8
          %s276 = scalar_lea.vmem %s2, %s275
        $region36: #{tpu_custom_call.1} parent=23 // pred_fallthru
          _
        // Predicated region
        $region37: #{tpu_custom_call.1} parent=23 // pred_check
          %p277 = pneg %p126
        $region38: #{tpu_custom_call.1} parent=23 // pred_check_branch
          %279 = sbr.rel (%p277) target = $region40
        $region39: #{tpu_custom_call.1} parent=23 // pred_region
          %s280 = sand.u32 %s116, 1
          %s281 = sand.u32 %s116, 1
          %s282 = smul.addr %s281, 144
          %s283 = scalar_lea.vmem [#allocation2], %s282
          %s284 = smul.u32 2, %s24
          %s285 = smul.addr %s284, 8
          %s286 = scalar_lea.vmem %s3, %s285
          // Predicated region
          $region41: #{tpu_custom_call.1} parent=39 // pred_check
            _
          $region42: #{tpu_custom_call.1} parent=39 // pred_check_branch
            %288 = sbr.rel (0) target = $region44
          $region43: #{tpu_custom_call.1} parent=39 // pred_region
            // Predicated region
            $region45: #{tpu_custom_call.1} parent=43 // pred_check
              _
            $region46: #{tpu_custom_call.1} parent=43 // pred_check_branch
              %290 = sbr.rel (0) target = $region48
            $region47: #{tpu_custom_call.1} parent=43 // pred_region
              // Predicated region
              $region60: #{tpu_custom_call.1} parent=47 // pred_check
                _
              $region61: #{tpu_custom_call.1} parent=47 // pred_check_branch
                %340 = sbr.rel (0) target = $region63
              $region62: #{tpu_custom_call.1} parent=47 // pred_region
                loop: start=0, step=1, limit=1
                $region64: #{tpu_custom_call.1} parent=62 // loop_pre_header
                  _
                $region65: #{tpu_custom_call.1} parent=62 // loop_header
                  %s342 = sphi 0, %s346
                  %p343 = scmp.ge.s32.totalorder %s342, 1
                  %s347 = sphi %s286, %s286
                  %s348 = sphi %s283, %s283
                $region66: #{tpu_custom_call.1} parent=62 // loop_header_branch
                  %345 = sbr.rel (%p343) target = $region70
                $region67: #{tpu_custom_call.1} parent=62 // loop_body
                  %v349 = vld [vmem:[%s347] sm:$0xff]
                  %350 = vst [vmem:[%s348] sm:$0xff] %v349
                  %v351 = vld [vmem:[%s347 + $0x8] sm:$0xff]
                  %352 = vst [vmem:[%s348 + $0x8] sm:$0xff] %v351
                  %v353 = vld [vmem:[%s347 + $0x20] sm:$0xff]
                  %354 = vst [vmem:[%s348 + $0x10] sm:$0xff] %v353
                  %v355 = vld [vmem:[%s347 + $0x28] sm:$0xff]
                  %356 = vst [vmem:[%s348 + $0x18] sm:$0xff] %v355
                  %v357 = vld [vmem:[%s347 + $0x40] sm:$0xff]
                  %358 = vst [vmem:[%s348 + $0x20] sm:$0xff] %v357
                  %v359 = vld [vmem:[%s347 + $0x48] sm:$0xff]
                  %360 = vst [vmem:[%s348 + $0x28] sm:$0xff] %v359
                  %v361 = vld [vmem:[%s347 + $0x60] sm:$0xff]
                  %362 = vst [vmem:[%s348 + $0x30] sm:$0xff] %v361
                  %v363 = vld [vmem:[%s347 + $0x68] sm:$0xff]
                  %364 = vst [vmem:[%s348 + $0x38] sm:$0xff] %v363
                  %v365 = vld [vmem:[%s347 + $0x80] sm:$0xff]
                  %366 = vst [vmem:[%s348 + $0x40] sm:$0xff] %v365
                  %v367 = vld [vmem:[%s347 + $0x88] sm:$0xff]
                  %368 = vst [vmem:[%s348 + $0x48] sm:$0xff] %v367
                  %v369 = vld [vmem:[%s347 + $0xa0] sm:$0xff]
                  %370 = vst [vmem:[%s348 + $0x50] sm:$0xff] %v369
                  %v371 = vld [vmem:[%s347 + $0xa8] sm:$0xff]
                  %372 = vst [vmem:[%s348 + $0x58] sm:$0xff] %v371
                  %v373 = vld [vmem:[%s347 + $0xc0] sm:$0xff]
                  %374 = vst [vmem:[%s348 + $0x60] sm:$0xff] %v373
                  %v375 = vld [vmem:[%s347 + $0xc8] sm:$0xff]
                  %376 = vst [vmem:[%s348 + $0x68] sm:$0xff] %v375
                  %v377 = vld [vmem:[%s347 + $0xe0] sm:$0xff]
                  %378 = vst [vmem:[%s348 + $0x70] sm:$0xff] %v377
                  %v379 = vld [vmem:[%s347 + $0xe8] sm:$0xff]
                  %380 = vst [vmem:[%s348 + $0x78] sm:$0xff] %v379
                  %v381 = vld [vmem:[%s347 + $0x100] sm:$0xff]
                  %382 = vst [vmem:[%s348 + $0x80] sm:$0xff] %v381
                  %v383 = vld [vmem:[%s347 + $0x108] sm:$0xff]
                  %384 = vst [vmem:[%s348 + $0x88] sm:$0xff] %v383
                $region68: #{tpu_custom_call.1} parent=62 // loop_footer
                  %s346 = sadd.s32 1, %s342
                $region69: #{tpu_custom_call.1} parent=62 // loop_footer_branch
                  %341 = sbr.rel target = $region65
                $region70: #{tpu_custom_call.1} parent=62 // loop_exit
                  _
              $region63: #{tpu_custom_call.1} parent=47 // pred_fallthru
                _
              // Predicated region
              $region71: #{tpu_custom_call.1} parent=47 // pred_check
                _
              $region72: #{tpu_custom_call.1} parent=47 // pred_check_branch
                %386 = sbr.rel target = $region74
              $region73: #{tpu_custom_call.1} parent=47 // pred_region
                _
              $region74: #{tpu_custom_call.1} parent=47 // pred_fallthru
                _
            $region48: #{tpu_custom_call.1} parent=43 // pred_fallthru
              _
            // Predicated region
            $region49: #{tpu_custom_call.1} parent=43 // pred_check
              _
            $region50: #{tpu_custom_call.1} parent=43 // pred_check_branch
              %292 = sbr.rel target = $region52
            $region51: #{tpu_custom_call.1} parent=43 // pred_region
              %s294 = ssub.s32 256, 1
              loop: start=0, step=1, limit=1
              $region53: #{tpu_custom_call.1} parent=51 // loop_pre_header
                _
              $region54: #{tpu_custom_call.1} parent=51 // loop_header
                %s296 = sphi 0, %s300
                %p297 = scmp.ge.s32.totalorder %s296, 1
                %s301 = sphi %s286, %s286
                %s302 = sphi %s283, %s283
              $region55: #{tpu_custom_call.1} parent=51 // loop_header_branch
                %299 = sbr.rel (%p297) target = $region59
              $region56: #{tpu_custom_call.1} parent=51 // loop_body
                %v303 = vld [vmem:[%s301] sm:%s294]
                %304 = vst [vmem:[%s302] sm:%s294] %v303
                %v305 = vld [vmem:[%s301 + $0x8] sm:%s294]
                %306 = vst [vmem:[%s302 + $0x8] sm:%s294] %v305
                %v307 = vld [vmem:[%s301 + $0x20] sm:%s294]
                %308 = vst [vmem:[%s302 + $0x10] sm:%s294] %v307
                %v309 = vld [vmem:[%s301 + $0x28] sm:%s294]
                %310 = vst [vmem:[%s302 + $0x18] sm:%s294] %v309
                %v311 = vld [vmem:[%s301 + $0x40] sm:%s294]
                %312 = vst [vmem:[%s302 + $0x20] sm:%s294] %v311
                %v313 = vld [vmem:[%s301 + $0x48] sm:%s294]
                %314 = vst [vmem:[%s302 + $0x28] sm:%s294] %v313
                %v315 = vld [vmem:[%s301 + $0x60] sm:%s294]
                %316 = vst [vmem:[%s302 + $0x30] sm:%s294] %v315
                %v317 = vld [vmem:[%s301 + $0x68] sm:%s294]
                %318 = vst [vmem:[%s302 + $0x38] sm:%s294] %v317
                %v319 = vld [vmem:[%s301 + $0x80] sm:%s294]
                %320 = vst [vmem:[%s302 + $0x40] sm:%s294] %v319
                %v321 = vld [vmem:[%s301 + $0x88] sm:%s294]
                %322 = vst [vmem:[%s302 + $0x48] sm:%s294] %v321
                %v323 = vld [vmem:[%s301 + $0xa0] sm:%s294]
                %324 = vst [vmem:[%s302 + $0x50] sm:%s294] %v323
                %v325 = vld [vmem:[%s301 + $0xa8] sm:%s294]
                %326 = vst [vmem:[%s302 + $0x58] sm:%s294] %v325
                %v327 = vld [vmem:[%s301 + $0xc0] sm:%s294]
                %328 = vst [vmem:[%s302 + $0x60] sm:%s294] %v327
                %v329 = vld [vmem:[%s301 + $0xc8] sm:%s294]
                %330 = vst [vmem:[%s302 + $0x68] sm:%s294] %v329
                %v331 = vld [vmem:[%s301 + $0xe0] sm:%s294]
                %332 = vst [vmem:[%s302 + $0x70] sm:%s294] %v331
                %v333 = vld [vmem:[%s301 + $0xe8] sm:%s294]
                %334 = vst [vmem:[%s302 + $0x78] sm:%s294] %v333
                %v335 = vld [vmem:[%s301 + $0x100] sm:%s294]
                %336 = vst [vmem:[%s302 + $0x80] sm:%s294] %v335
                %v337 = vld [vmem:[%s301 + $0x108] sm:%s294]
                %338 = vst [vmem:[%s302 + $0x88] sm:%s294] %v337
              $region57: #{tpu_custom_call.1} parent=51 // loop_footer
                %s300 = sadd.s32 1, %s296
              $region58: #{tpu_custom_call.1} parent=51 // loop_footer_branch
                %295 = sbr.rel target = $region54
              $region59: #{tpu_custom_call.1} parent=51 // loop_exit
                _
            $region52: #{tpu_custom_call.1} parent=43 // pred_fallthru
              _
          $region44: #{tpu_custom_call.1} parent=39 // pred_fallthru
            _
          %387 = vnop
        $region40: #{tpu_custom_call.1} parent=23 // pred_fallthru
          _
        // Predicated region
        $region75: #{tpu_custom_call.1} parent=23 // pred_check
          %p388 = pneg %p152
        $region76: #{tpu_custom_call.1} parent=23 // pred_check_branch
          %390 = sbr.rel (%p388) target = $region78
        $region77: #{tpu_custom_call.1} parent=23 // pred_region
          %s391 = smul.u32 2, %s24
          %p392 = scmp.lt.s32.totalorder %s391, 3
          %s393 = scalar_select %p392, %s391, 3
          %s394 = smul.addr %s393, 8
          %s395 = scalar_lea.vmem %s4, %s394
          %s396 = smul.u32 2, %s24
        $region78: #{tpu_custom_call.1} parent=23 // pred_fallthru
          _
      $region24: #{tpu_custom_call.1} parent=5 // pred_fallthru
        _
      %p397 = scmp.le.s32.totalorder 1, %s16
      %p398 = scmp.lt.s32.totalorder %s16, 5
      %p399 = pnand %p397, %p398
      %p400 = pneg %p399
      // Predicated region
      $region79: #{tpu_custom_call.1} parent=5 // pred_check
        _
      $region80: #{tpu_custom_call.1} parent=5 // pred_check_branch
        %402 = sbr.rel (%p399) target = $region82
      $region81: #{tpu_custom_call.1} parent=5 // pred_region
        %s403 = ssub.s32 %s16, 1
        %s404 = sand.u32 %s119, 1
        %s405 = sand.u32 %s119, 1
        %s406 = smul.addr %s405, 144
        %s407 = scalar_lea.vmem [#allocation2], %s406
        // Predicated region
        $region83: #{tpu_custom_call.1} parent=81 // pred_check
          %p408 = pneg %p132
        $region84: #{tpu_custom_call.1} parent=81 // pred_check_branch
          %410 = sbr.rel (%p408) target = $region86
        $region85: #{tpu_custom_call.1} parent=81 // pred_region
          _
        $region86: #{tpu_custom_call.1} parent=81 // pred_fallthru
          _
        %p411 = scmp.lt.s32.totalorder %s25, 1
        %s412 = scalar_select %p411, %s25, 1
        %s413 = smul.addr %s412, 8
        %s414 = smul.addr %s413, 8
        %s415 = scalar_lea.vmem %s0, %s414
        %p416 = pneg %p54
        %p417 = pneg %p51
        %p418 = scmp.lt.s32.totalorder %s26, 1
        %s419 = scalar_select %p418, %s26, 1
        %s420 = smul.addr %s419, 4
        %s421 = smul.addr %s420, 4
        %s422 = scalar_lea.vmem %s1, %s421
        %p423 = pneg %p80
        %p424 = pneg %p77
        %p425 = scmp.lt.s32.totalorder %s26, 1
        %s426 = scalar_select %p425, %s26, 1
        %s427 = smul.addr %s426, 4
        %s428 = smul.addr %s427, 8
        %s429 = scalar_lea.vmem %s2, %s428
        %p430 = pneg %p106
        %p431 = pneg %p103
        %s432 = sand.u32 %s119, 1
        %s433 = sand.u32 %s119, 1
        %s434 = smul.addr %s433, 144
        %s435 = scalar_lea.vmem [#allocation2], %s434
        %p436 = pneg %p132
        %p437 = pneg %p129
        %s438 = smul.u32 2, %s26
        %p439 = scmp.lt.s32.totalorder %s438, 3
        %s440 = scalar_select %p439, %s438, 3
        %s441 = smul.addr %s440, 8
        %s442 = scalar_lea.vmem %s4, %s441
        %p443 = pneg %p158
        %p444 = pneg %p155
        %p445 = pneg %p179
        %p446 = pneg %p176
        %p447 = pneg %p200
        %p448 = pneg %p197
        %p449 = pneg %p228
        %p450 = pneg %p225
        %s451 = sand.u32 %s215, 1
        %s452 = scalar_lea.sflag [#allocation4], %s451
        %s453 = sand.u32 %s215, 1
        %s454 = smul.addr %s453, 32
        %s455 = scalar_lea.vmem [#allocation3], %s454
        %p456 = scmp.lt.s32.totalorder %s25, 1
        %s457 = scalar_select %p456, %s25, 1
        %s458 = smul.addr %s457, 8
        %s459 = smul.addr %s458, 8
        %s460 = scalar_lea.vmem %s0, %s459
        %p461 = scmp.lt.s32.totalorder %s26, 1
        %s462 = scalar_select %p461, %s26, 1
        %s463 = smul.addr %s462, 4
        %s464 = smul.addr %s463, 4
        %s465 = scalar_lea.vmem %s1, %s464
        %p466 = scmp.lt.s32.totalorder %s26, 1
        %s467 = scalar_select %p466, %s26, 1
        %s468 = smul.addr %s467, 4
        %s469 = smul.addr %s468, 8
        %s470 = scalar_lea.vmem %s2, %s469
        %s471 = smul.u32 2, %s26
        %s472 = smul.u32 2, %s26
        %p473 = scmp.lt.s32.totalorder %s472, 3
        %s474 = scalar_select %p473, %s472, 3
        %s475 = smul.addr %s474, 8
        %s476 = scalar_lea.vmem %s4, %s475
        %s477 = smul.u32 2, %s26
        %s478 = smul.u32 2, %s26
        %s481 = smul.u32 %s26, 16
        %v482 = vld [vmem:[%s460] sm:$0xff]
        %v483 = vld [vmem:[%s460 + $0x8] sm:$0xff]
        %v484 = vld [vmem:[%s460 + $0x10] sm:$0xff]
        %v485 = vld [vmem:[%s460 + $0x18] sm:$0xff]
        %v486 = vld [vmem:[%s460 + $0x20] sm:$0xff]
        %v487 = vld [vmem:[%s460 + $0x28] sm:$0xff]
        %v488 = vld [vmem:[%s460 + $0x30] sm:$0xff]
        %v489 = vld [vmem:[%s460 + $0x38] sm:$0xff]
        %s490 = sshra.s32 %s481, 3
        %s491 = sand.u32 %s481, 7
        %s492 = smul.u32 %s490, 2
        %s493 = smul.addr %s492, 8
        %s494 = scalar_lea.vmem %s460, %s493
        %v495 = vld [vmem:[%s494] sm:$0xff]
        %v496 = vld [vmem:[%s494 + $0x8] sm:$0xff]
        %v497 = vld [vmem:[%s494 + $0x10] sm:$0xff]
        %v498 = vld [vmem:[%s494 + $0x18] sm:$0xff]
        %v499 = vld [vmem:[%s465] sm:$0xf]
        %v500 = vld [vmem:[%s465 + $0x4] sm:$0xf]
        %v501 = vld [vmem:[%s465 + $0x8] sm:$0xf]
        %v502 = vld [vmem:[%s465 + $0xc] sm:$0xf]
        %v503 = vpack.c.bf16 %v484, %v482
        %v504 = vpack.c.bf16 %v485, %v483
        %v505 = vpack.c.bf16 %v488, %v486
        %v506 = vpack.c.bf16 %v489, %v487
        %v507 = vld [vmem:[%s470] sm:$0xff]
        %v508 = vld [vmem:[%s470 + $0x8] sm:$0xff]
        %v509 = vld [vmem:[%s470 + $0x10] sm:$0xff]
        %v510 = vld [vmem:[%s470 + $0x18] sm:$0xff]
        %512 = vset.pattern.permute.xlu0 0
        %513 = vperm.xlu0 %512, %v507
        %v514 = vpop.permute.xlu0 %513
        %517 = vset.pattern.permute.xlu0 0
        %518 = vperm.xlu0 %517, %v508
        %v519 = vpop.permute.xlu0 %518
        %522 = vset.pattern.permute.xlu0 0
        %523 = vperm.xlu0 %522, %v509
        %v524 = vpop.permute.xlu0 %523
        %527 = vset.pattern.permute.xlu0 0
        %528 = vperm.xlu0 %527, %v510
        %v529 = vpop.permute.xlu0 %528
        %v535 = vunpack.c.l.b16 %v499
        %v536 = vunpack.c.l.b16 %v500
        %v537 = vunpack.c.l.b16 %v501
        %v538 = vunpack.c.l.b16 %v502
        %v539 = vpack.c.b16 %v536, %v535
        %v540 = vpack.c.b16 %v538, %v537
        %vm541 = vcmask 261120
        %v543 = vsel %vm541, %v539, 0
        %v546 = vsel %vm541, %v540, 0
        %548 = vmatpush.bf16.msra.mxu0 0
        %549 = vmatpush.bf16.msra.mxu0 0
        %550 = vmatpush.bf16.msra.mxu0 0
        %551 = vmatpush.bf16.msra.mxu0 0
        %552 = vmatpush.bf16.msra.mxu0 0
        %553 = vmatpush.bf16.msra.mxu0 0
        %554 = vmatpush.bf16.msra.mxu0 %v505
        %555 = vmatpush.bf16.msra.mxu0 %v503
        %556 = vmatmul.bf16.gmra.mxu0 %v543
        %v557 = vpop.f32.mrf.mxu0
        %v558 = vadd.f32 %v514, %v557
        %v559 = vpop.f32.mrf.mxu0
        %v560 = vadd.f32 %v519, %v559
        %561 = vmatmul.bf16.gmra.mxu0 %v546
        %v562 = vpop.f32.mrf.mxu0
        %v563 = vadd.f32 %v524, %v562
        %v564 = vpop.f32.mrf.mxu0
        %v565 = vadd.f32 %v529, %v564
        %566 = vdwg.mxu0
        %567 = vmatpush.bf16.msra.mxu0 0
        %568 = vmatpush.bf16.msra.mxu0 0
        %569 = vmatpush.bf16.msra.mxu0 0
        %570 = vmatpush.bf16.msra.mxu0 0
        %571 = vmatpush.bf16.msra.mxu0 0
        %572 = vmatpush.bf16.msra.mxu0 0
        %573 = vmatpush.bf16.msra.mxu0 %v506
        %574 = vmatpush.bf16.msra.mxu0 %v504
        %575 = vmatmul.bf16.gmra.mxu0 %v543
        %v576 = vpop.f32.mrf.mxu0
        %v577 = vadd.f32 %v514, %v576
        %v578 = vpop.f32.mrf.mxu0
        %v579 = vadd.f32 %v519, %v578
        %580 = vmatmul.bf16.gmra.mxu0 %v546
        %v581 = vpop.f32.mrf.mxu0
        %v582 = vadd.f32 %v524, %v581
        %v583 = vpop.f32.mrf.mxu0
        %v584 = vadd.f32 %v529, %v583
        %585 = vdwg.mxu0
        %vm586 = vcmp.gt.f32.partialorder %v558, 0.0
        %vm587 = vcmp.gt.f32.partialorder %v577, 0.0
        %vm588 = vcmp.gt.f32.partialorder %v560, 0.0
        %vm589 = vcmp.gt.f32.partialorder %v579, 0.0
        %vm590 = vcmp.gt.f32.partialorder %v563, 0.0
        %vm591 = vcmp.gt.f32.partialorder %v582, 0.0
        %vm592 = vcmp.gt.f32.partialorder %v565, 0.0
        %vm593 = vcmp.gt.f32.partialorder %v584, 0.0
        %v594 = vadd.f32 %v558, 1.0
        %v595 = vadd.f32 %v577, 1.0
        %v596 = vadd.f32 %v560, 1.0
        %v597 = vadd.f32 %v579, 1.0
        %v598 = vadd.f32 %v563, 1.0
        %v599 = vadd.f32 %v582, 1.0
        %v600 = vadd.f32 %v565, 1.0
        %v601 = vadd.f32 %v584, 1.0
        %v602 = vmin.f32 %v558, 0.0
        %v603 = vmin.f32 %v577, 0.0
        %v604 = vmin.f32 %v560, 0.0
        %v605 = vmin.f32 %v579, 0.0
        %v606 = vmin.f32 %v563, 0.0
        %v607 = vmin.f32 %v582, 0.0
        %v608 = vmin.f32 %v565, 0.0
        %v609 = vmin.f32 %v584, 0.0
        %v610 = vmul.f32 %v602, 1.442695
        %v611 = vpow.pop %v610
        %v612 = vmul.f32 %v603, 1.442695
        %v613 = vpow.pop %v612
        %v614 = vmul.f32 %v604, 1.442695
        %v615 = vpow.pop %v614
        %v616 = vmul.f32 %v605, 1.442695
        %v617 = vpow.pop %v616
        %v618 = vmul.f32 %v606, 1.442695
        %v619 = vpow.pop %v618
        %v620 = vmul.f32 %v607, 1.442695
        %v621 = vpow.pop %v620
        %v622 = vmul.f32 %v608, 1.442695
        %v623 = vpow.pop %v622
        %v624 = vmul.f32 %v609, 1.442695
        %v625 = vpow.pop %v624
        %v626 = vsel %vm586, %v594, %v611
        %v627 = vsel %vm587, %v595, %v613
        %v628 = vsel %vm588, %v596, %v615
        %v629 = vsel %vm589, %v597, %v617
        %v630 = vsel %vm590, %v598, %v619
        %v631 = vsel %vm591, %v599, %v621
        %v632 = vsel %vm592, %v600, %v623
        %v633 = vsel %vm593, %v601, %v625
        %634 = vrot.lane.b32.xlu0 %v495, 17
        %v635 = vpop.permute.xlu0 %634
        %636 = vrot.lane.b32.xlu0 %v497, 17
        %v637 = vpop.permute.xlu0 %636
        %638 = vrot.lane.b32.xlu0 %v496, 17
        %v639 = vpop.permute.xlu0 %638
        %640 = vrot.lane.b32.xlu0 %v498, 17
        %v641 = vpop.permute.xlu0 %640
        %v642 = vlaneseq
        %v643 = vand.u32 %v642, 127
        %vm644 = vcmp.lt.s32.totalorder %v643, 17
        %v645 = vsel %vm644, %v635, %v639
        %v646 = vsel %vm644, %v637, %v641
        %v647 = vsel %vm644, %v639, %v635
        %v648 = vsel %vm644, %v641, %v637
        %v649 = vld [vmem:[%s407] sm:$0xff]
        %v650 = vld [vmem:[%s407 + $0x8] sm:$0xff]
        %652 = vset.pattern.permute.xlu0 0
        %653 = vperm.xlu0 %652, %v649
        %v654 = vpop.permute.xlu0 %653
        %657 = vset.pattern.permute.xlu0 0
        %658 = vperm.xlu0 %657, %v650
        %v659 = vpop.permute.xlu0 %658
        %v661 = vmul.f32 %v654, %v647
        %v662 = vmul.f32 %v654, %v645
        %v663 = vmul.f32 %v659, %v648
        %v664 = vmul.f32 %v659, %v646
        %v665 = vld [vmem:[%s5] sm:$0x3]
        %v667 = vperm.slane %v665, 0
        %v668 = vperm.slane %v665, 1
        %v671 = vmul.f32 %v661, %v667
        %v672 = vmul.f32 %v662, %v668
        %v673 = vmul.f32 %v663, %v667
        %v674 = vmul.f32 %v664, %v668
        %675 = vrot.lane.b32.xlu0 %v495, 16
        %v676 = vpop.permute.xlu0 %675
        %677 = vrot.lane.b32.xlu0 %v497, 16
        %v678 = vpop.permute.xlu0 %677
        %679 = vrot.lane.b32.xlu0 %v496, 16
        %v680 = vpop.permute.xlu0 %679
        %681 = vrot.lane.b32.xlu0 %v498, 16
        %v682 = vpop.permute.xlu0 %681
        %vm683 = vcmp.lt.s32.totalorder %v643, 16
        %v684 = vsel %vm683, %v676, %v680
        %v685 = vsel %vm683, %v678, %v682
        %v686 = vsel %vm683, %v680, %v676
        %v687 = vsel %vm683, %v682, %v678
        %s688 = scalar_lea.vmem %s407, 16 [#allocation2]
        %v689 = vld [vmem:[%s688] sm:$0xff]
        %v690 = vld [vmem:[%s688 + $0x8] sm:$0xff]
        %692 = vset.pattern.permute.xlu0 0
        %693 = vperm.xlu0 %692, %v689
        %v694 = vpop.permute.xlu0 %693
        %697 = vset.pattern.permute.xlu0 0
        %698 = vperm.xlu0 %697, %v690
        %v699 = vpop.permute.xlu0 %698
        %v701 = vmul.f32 %v694, %v686
        %v702 = vmul.f32 %v694, %v684
        %v703 = vmul.f32 %v699, %v687
        %v704 = vmul.f32 %v699, %v685
        %s705 = scalar_lea.vmem %s5, 2
        %v706 = vld [vmem:[%s705] sm:$0x3]
        %v708 = vperm.slane %v706, 0
        %v709 = vperm.slane %v706, 1
        %v712 = vmul.f32 %v701, %v708
        %v713 = vmul.f32 %v702, %v709
        %v714 = vmul.f32 %v703, %v708
        %v715 = vmul.f32 %v704, %v709
        %716 = vrot.lane.b32.xlu0 %v495, 15
        %v717 = vpop.permute.xlu0 %716
        %718 = vrot.lane.b32.xlu0 %v497, 15
        %v719 = vpop.permute.xlu0 %718
        %720 = vrot.lane.b32.xlu0 %v496, 15
        %v721 = vpop.permute.xlu0 %720
        %722 = vrot.lane.b32.xlu0 %v498, 15
        %v723 = vpop.permute.xlu0 %722
        %vm724 = vcmp.lt.s32.totalorder %v643, 15
        %v725 = vsel %vm724, %v717, %v721
        %v726 = vsel %vm724, %v719, %v723
        %v727 = vsel %vm724, %v721, %v717
        %v728 = vsel %vm724, %v723, %v719
        %s729 = scalar_lea.vmem %s407, 32 [#allocation2]
        %v730 = vld [vmem:[%s729] sm:$0xff]
        %v731 = vld [vmem:[%s729 + $0x8] sm:$0xff]
        %733 = vset.pattern.permute.xlu0 0
        %734 = vperm.xlu0 %733, %v730
        %v735 = vpop.permute.xlu0 %734
        %738 = vset.pattern.permute.xlu0 0
        %739 = vperm.xlu0 %738, %v731
        %v740 = vpop.permute.xlu0 %739
        %v742 = vmul.f32 %v735, %v727
        %v743 = vmul.f32 %v735, %v725
        %v744 = vmul.f32 %v740, %v728
        %v745 = vmul.f32 %v740, %v726
        %s746 = scalar_lea.vmem %s5, 4
        %v747 = vld [vmem:[%s746] sm:$0x3]
        %v749 = vperm.slane %v747, 0
        %v750 = vperm.slane %v747, 1
        %v753 = vmul.f32 %v742, %v749
        %v754 = vmul.f32 %v743, %v750
        %v755 = vmul.f32 %v744, %v749
        %v756 = vmul.f32 %v745, %v750
        %757 = vrot.lane.b32.xlu0 %v495, 1
        %v758 = vpop.permute.xlu0 %757
        %759 = vrot.lane.b32.xlu0 %v497, 1
        %v760 = vpop.permute.xlu0 %759
        %761 = vrot.lane.b32.xlu0 %v496, 1
        %v762 = vpop.permute.xlu0 %761
        %763 = vrot.lane.b32.xlu0 %v498, 1
        %v764 = vpop.permute.xlu0 %763
        %vm765 = vcmp.lt.s32.totalorder %v643, 1
        %v766 = vsel %vm765, %v758, %v762
        %v767 = vsel %vm765, %v760, %v764
        %v768 = vsel %vm765, %v762, %v758
        %v769 = vsel %vm765, %v764, %v760
        %s770 = scalar_lea.vmem %s407, 48 [#allocation2]
        %v771 = vld [vmem:[%s770] sm:$0xff]
        %v772 = vld [vmem:[%s770 + $0x8] sm:$0xff]
        %774 = vset.pattern.permute.xlu0 0
        %775 = vperm.xlu0 %774, %v771
        %v776 = vpop.permute.xlu0 %775
        %779 = vset.pattern.permute.xlu0 0
        %780 = vperm.xlu0 %779, %v772
        %v781 = vpop.permute.xlu0 %780
        %v783 = vmul.f32 %v776, %v768
        %v784 = vmul.f32 %v776, %v766
        %v785 = vmul.f32 %v781, %v769
        %v786 = vmul.f32 %v781, %v767
        %s787 = scalar_lea.vmem %s5, 6
        %v788 = vld [vmem:[%s787] sm:$0x3]
        %v790 = vperm.slane %v788, 0
        %v791 = vperm.slane %v788, 1
        %v794 = vmul.f32 %v783, %v790
        %v795 = vmul.f32 %v784, %v791
        %v796 = vmul.f32 %v785, %v790
        %v797 = vmul.f32 %v786, %v791
        %s798 = scalar_lea.vmem %s407, 64 [#allocation2]
        %v799 = vld [vmem:[%s798] sm:$0xff]
        %v800 = vld [vmem:[%s798 + $0x8] sm:$0xff]
        %802 = vset.pattern.permute.xlu0 0
        %803 = vperm.xlu0 %802, %v799
        %v804 = vpop.permute.xlu0 %803
        %807 = vset.pattern.permute.xlu0 0
        %808 = vperm.xlu0 %807, %v800
        %v809 = vpop.permute.xlu0 %808
        %v811 = vmul.f32 %v804, %v495
        %v812 = vmul.f32 %v804, %v496
        %v813 = vmul.f32 %v809, %v497
        %v814 = vmul.f32 %v809, %v498
        %815 = vrot.lane.b32.xlu0 %v495, 127
        %v816 = vpop.permute.xlu0 %815
        %817 = vrot.lane.b32.xlu0 %v497, 127
        %v818 = vpop.permute.xlu0 %817
        %819 = vrot.lane.b32.xlu0 %v496, 127
        %v820 = vpop.permute.xlu0 %819
        %821 = vrot.lane.b32.xlu0 %v498, 127
        %v822 = vpop.permute.xlu0 %821
        %vm823 = vcmp.lt.s32.totalorder %v643, 127
        %v824 = vsel %vm823, %v816, %v820
        %v825 = vsel %vm823, %v818, %v822
        %v826 = vsel %vm823, %v820, %v816
        %v827 = vsel %vm823, %v822, %v818
        %s828 = scalar_lea.vmem %s407, 80 [#allocation2]
        %v829 = vld [vmem:[%s828] sm:$0xff]
        %v830 = vld [vmem:[%s828 + $0x8] sm:$0xff]
        %832 = vset.pattern.permute.xlu0 0
        %833 = vperm.xlu0 %832, %v829
        %v834 = vpop.permute.xlu0 %833
        %837 = vset.pattern.permute.xlu0 0
        %838 = vperm.xlu0 %837, %v830
        %v839 = vpop.permute.xlu0 %838
        %v841 = vmul.f32 %v834, %v824
        %v842 = vmul.f32 %v834, %v826
        %v843 = vmul.f32 %v839, %v825
        %v844 = vmul.f32 %v839, %v827
        %s845 = scalar_lea.vmem %s5, 10
        %v846 = vld [vmem:[%s845] sm:$0x3]
        %v848 = vperm.slane %v846, 0
        %v849 = vperm.slane %v846, 1
        %v852 = vmul.f32 %v841, %v848
        %v853 = vmul.f32 %v842, %v849
        %v854 = vmul.f32 %v843, %v848
        %v855 = vmul.f32 %v844, %v849
        %856 = vrot.lane.b32.xlu0 %v495, 113
        %v857 = vpop.permute.xlu0 %856
        %858 = vrot.lane.b32.xlu0 %v497, 113
        %v859 = vpop.permute.xlu0 %858
        %860 = vrot.lane.b32.xlu0 %v496, 113
        %v861 = vpop.permute.xlu0 %860
        %862 = vrot.lane.b32.xlu0 %v498, 113
        %v863 = vpop.permute.xlu0 %862
        %vm864 = vcmp.lt.s32.totalorder %v643, 113
        %v865 = vsel %vm864, %v857, %v861
        %v866 = vsel %vm864, %v859, %v863
        %v867 = vsel %vm864, %v861, %v857
        %v868 = vsel %vm864, %v863, %v859
        %s869 = scalar_lea.vmem %s407, 96 [#allocation2]
        %v870 = vld [vmem:[%s869] sm:$0xff]
        %v871 = vld [vmem:[%s869 + $0x8] sm:$0xff]
        %873 = vset.pattern.permute.xlu0 0
        %874 = vperm.xlu0 %873, %v870
        %v875 = vpop.permute.xlu0 %874
        %878 = vset.pattern.permute.xlu0 0
        %879 = vperm.xlu0 %878, %v871
        %v880 = vpop.permute.xlu0 %879
        %v882 = vmul.f32 %v875, %v865
        %v883 = vmul.f32 %v875, %v867
        %v884 = vmul.f32 %v880, %v866
        %v885 = vmul.f32 %v880, %v868
        %s886 = scalar_lea.vmem %s5, 12
        %v887 = vld [vmem:[%s886] sm:$0x3]
        %v889 = vperm.slane %v887, 0
        %v890 = vperm.slane %v887, 1
        %v893 = vmul.f32 %v882, %v889
        %v894 = vmul.f32 %v883, %v890
        %v895 = vmul.f32 %v884, %v889
        %v896 = vmul.f32 %v885, %v890
        %897 = vrot.lane.b32.xlu0 %v495, 112
        %v898 = vpop.permute.xlu0 %897
        %899 = vrot.lane.b32.xlu0 %v497, 112
        %v900 = vpop.permute.xlu0 %899
        %901 = vrot.lane.b32.xlu0 %v496, 112
        %v902 = vpop.permute.xlu0 %901
        %903 = vrot.lane.b32.xlu0 %v498, 112
        %v904 = vpop.permute.xlu0 %903
        %vm905 = vcmp.lt.s32.totalorder %v643, 112
        %v906 = vsel %vm905, %v898, %v902
        %v907 = vsel %vm905, %v900, %v904
        %v908 = vsel %vm905, %v902, %v898
        %v909 = vsel %vm905, %v904, %v900
        %s910 = scalar_lea.vmem %s407, 112 [#allocation2]
        %v911 = vld [vmem:[%s910] sm:$0xff]
        %v912 = vld [vmem:[%s910 + $0x8] sm:$0xff]
        %914 = vset.pattern.permute.xlu0 0
        %915 = vperm.xlu0 %914, %v911
        %v916 = vpop.permute.xlu0 %915
        %919 = vset.pattern.permute.xlu0 0
        %920 = vperm.xlu0 %919, %v912
        %v921 = vpop.permute.xlu0 %920
        %v923 = vmul.f32 %v916, %v906
        %v924 = vmul.f32 %v916, %v908
        %v925 = vmul.f32 %v921, %v907
        %v926 = vmul.f32 %v921, %v909
        %s927 = scalar_lea.vmem %s5, 14
        %v928 = vld [vmem:[%s927] sm:$0x3]
        %v930 = vperm.slane %v928, 0
        %v931 = vperm.slane %v928, 1
        %v934 = vmul.f32 %v923, %v930
        %v935 = vmul.f32 %v924, %v931
        %v936 = vmul.f32 %v925, %v930
        %v937 = vmul.f32 %v926, %v931
        %938 = vrot.lane.b32.xlu0 %v495, 111
        %v939 = vpop.permute.xlu0 %938
        %940 = vrot.lane.b32.xlu0 %v497, 111
        %v941 = vpop.permute.xlu0 %940
        %942 = vrot.lane.b32.xlu0 %v496, 111
        %v943 = vpop.permute.xlu0 %942
        %944 = vrot.lane.b32.xlu0 %v498, 111
        %v945 = vpop.permute.xlu0 %944
        %vm946 = vcmp.lt.s32.totalorder %v643, 111
        %v947 = vsel %vm946, %v939, %v943
        %v948 = vsel %vm946, %v941, %v945
        %v949 = vsel %vm946, %v943, %v939
        %v950 = vsel %vm946, %v945, %v941
        %s951 = scalar_lea.vmem %s407, 128 [#allocation2]
        %v952 = vld [vmem:[%s951] sm:$0xff]
        %v953 = vld [vmem:[%s951 + $0x8] sm:$0xff]
        %955 = vset.pattern.permute.xlu0 0
        %956 = vperm.xlu0 %955, %v952
        %v957 = vpop.permute.xlu0 %956
        %960 = vset.pattern.permute.xlu0 0
        %961 = vperm.xlu0 %960, %v953
        %v962 = vpop.permute.xlu0 %961
        %v964 = vmul.f32 %v957, %v947
        %v965 = vmul.f32 %v957, %v949
        %v966 = vmul.f32 %v962, %v948
        %v967 = vmul.f32 %v962, %v950
        %s968 = scalar_lea.vmem %s5, 16
        %v969 = vld [vmem:[%s968] sm:$0x3]
        %v971 = vperm.slane %v969, 0
        %v972 = vperm.slane %v969, 1
        %v975 = vmul.f32 %v964, %v971
        %v976 = vmul.f32 %v965, %v972
        %v977 = vmul.f32 %v966, %v971
        %v978 = vmul.f32 %v967, %v972
        %v979 = vadd.f32 %v671, %v712
        %v980 = vadd.f32 %v672, %v713
        %v981 = vadd.f32 %v673, %v714
        %v982 = vadd.f32 %v674, %v715
        %v983 = vadd.f32 %v753, %v794
        %v984 = vadd.f32 %v754, %v795
        %v985 = vadd.f32 %v755, %v796
        %v986 = vadd.f32 %v756, %v797
        %v987 = vadd.f32 %v811, %v852
        %v988 = vadd.f32 %v812, %v853
        %v989 = vadd.f32 %v813, %v854
        %v990 = vadd.f32 %v814, %v855
        %v991 = vadd.f32 %v893, %v934
        %v992 = vadd.f32 %v894, %v935
        %v993 = vadd.f32 %v895, %v936
        %v994 = vadd.f32 %v896, %v937
        %v995 = vadd.f32 %v979, %v983
        %v996 = vadd.f32 %v980, %v984
        %v997 = vadd.f32 %v981, %v985
        %v998 = vadd.f32 %v982, %v986
        %v999 = vadd.f32 %v987, %v991
        %v1000 = vadd.f32 %v988, %v992
        %v1001 = vadd.f32 %v989, %v993
        %v1002 = vadd.f32 %v990, %v994
        %v1003 = vadd.f32 %v995, %v999
        %v1004 = vadd.f32 %v996, %v1000
        %v1005 = vadd.f32 %v997, %v1001
        %v1006 = vadd.f32 %v998, %v1002
        %v1007 = vadd.f32 %v1003, %v975
        %v1008 = vadd.f32 %v1004, %v976
        %v1009 = vadd.f32 %v1005, %v977
        %v1010 = vadd.f32 %v1006, %v978
        %v1011 = vld [vmem:[%s476] sm:$0xff]
        %v1012 = vld [vmem:[%s476 + $0x8] sm:$0xff]
        %1014 = vset.pattern.permute.xlu0 0
        %1015 = vperm.xlu0 %1014, %v1011
        %v1016 = vpop.permute.xlu0 %1015
        %1019 = vset.pattern.permute.xlu0 0
        %1020 = vperm.xlu0 %1019, %v1012
        %v1021 = vpop.permute.xlu0 %1020
        %v1023 = vadd.f32 %v1007, %v1016
        %v1024 = vadd.f32 %v1008, %v1016
        %v1025 = vadd.f32 %v1009, %v1021
        %v1026 = vadd.f32 %v1010, %v1021
        %v1027 = vld [vmem:[%s6] sm:$0xff]
        %v1028 = vld [vmem:[%s6 + $0x8] sm:$0xff]
        %v1029 = vpack.c.bf16 %v497, %v495
        %v1030 = vpack.c.bf16 %v498, %v496
        %v1031 = vpack.c.bf16 %v628, %v626
        %v1032 = vpack.c.bf16 %v629, %v627
        %v1033 = vpack.c.bf16 %v632, %v630
        %v1034 = vpack.c.bf16 %v633, %v631
        %1035 = vmatpush.bf16.xpose.msra.mxu0 0
        %1036 = vmatpush.bf16.xpose.msra.mxu0 0
        %1037 = vmatpush.bf16.xpose.msra.mxu0 0
        %1038 = vmatpush.bf16.xpose.msra.mxu0 0
        %1039 = vmatpush.bf16.xpose.msra.mxu0 0
        %1040 = vmatpush.bf16.xpose.msra.mxu0 0
        %1041 = vmatpush.bf16.xpose.msra.mxu0 0
        %1042 = vmatpush.bf16.xpose.msra.mxu0 %v1033
        %1043 = vmatmul.bf16.gmra.mxu0 %v1029
        %v1044 = vpop.f32.mrf.mxu0
        %v1045 = vadd.f32 0.0, %v1044
        %v1046 = vpop.f32.mrf.mxu0
        %v1047 = vadd.f32 0.0, %v1046
        %1048 = vdwg.mxu0
        %1049 = vmatpush.bf16.xpose.msra.mxu0 0
        %1050 = vmatpush.bf16.xpose.msra.mxu0 0
        %1051 = vmatpush.bf16.xpose.msra.mxu0 0
        %1052 = vmatpush.bf16.xpose.msra.mxu0 0
        %1053 = vmatpush.bf16.xpose.msra.mxu0 0
        %1054 = vmatpush.bf16.xpose.msra.mxu0 0
        %1055 = vmatpush.bf16.xpose.msra.mxu0 0
        %1056 = vmatpush.bf16.xpose.msra.mxu0 %v1034
        %1057 = vmatmul.bf16.gmra.mxu0 %v1030
        %v1058 = vpop.f32.mrf.mxu0
        %v1059 = vadd.f32 %v1045, %v1058
        %v1060 = vpop.f32.mrf.mxu0
        %v1061 = vadd.f32 %v1047, %v1060
        %1062 = vdwg.mxu0
        %1063 = vmatpush.bf16.xpose.msra.mxu0 0
        %1064 = vmatpush.bf16.xpose.msra.mxu0 0
        %1065 = vmatpush.bf16.xpose.msra.mxu0 0
        %1066 = vmatpush.bf16.xpose.msra.mxu0 0
        %1067 = vmatpush.bf16.xpose.msra.mxu0 0
        %1068 = vmatpush.bf16.xpose.msra.mxu0 0
        %1069 = vmatpush.bf16.xpose.msra.mxu0 0
        %1070 = vmatpush.bf16.xpose.msra.mxu0 %v1033
        %1071 = vmatmul.bf16.gmra.mxu0 1065369472
        %v1072 = vpop.f32.mrf.mxu0
        %v1073 = vadd.f32 0.0, %v1072
        %v1074 = vpop.f32.mrf.mxu0
        %1075 = vdwg.mxu0
        %1076 = vmatpush.bf16.xpose.msra.mxu0 0
        %1077 = vmatpush.bf16.xpose.msra.mxu0 0
        %1078 = vmatpush.bf16.xpose.msra.mxu0 0
        %1079 = vmatpush.bf16.xpose.msra.mxu0 0
        %1080 = vmatpush.bf16.xpose.msra.mxu0 0
        %1081 = vmatpush.bf16.xpose.msra.mxu0 0
        %1082 = vmatpush.bf16.xpose.msra.mxu0 0
        %1083 = vmatpush.bf16.xpose.msra.mxu0 %v1034
        %1084 = vmatmul.bf16.gmra.mxu0 1065369472
        %v1085 = vpop.f32.mrf.mxu0
        %v1086 = vadd.f32 %v1073, %v1085
        %v1087 = vpop.f32.mrf.mxu0
        %1088 = vdwg.mxu0
        %v1089 = vmul.f32 %v1059, %v1027
        %v1090 = vmul.f32 %v1061, %v1028
        %v1091 = vperm.slane %v1086, 0
        %v1092 = vmul.f32 %v1027, %v1091
        %v1093 = vmul.f32 %v1028, %v1091
        %v1094 = vpack.c.bf16 %v1090, %v1089
        %v1095 = vpack.c.bf16 %v1093, %v1092
        %vm1096 = vcmask 130048
        %v1098 = vsel %vm1096, %v1094, 0
        %v1101 = vsel %vm1096, %v1095, 0
        %1103 = vmatpush.bf16.msra.mxu0 0
        %1104 = vmatpush.bf16.msra.mxu0 0
        %1105 = vmatpush.bf16.msra.mxu0 0
        %1106 = vmatpush.bf16.msra.mxu0 0
        %1107 = vmatpush.bf16.msra.mxu0 0
        %1108 = vmatpush.bf16.msra.mxu0 0
        %1109 = vmatpush.bf16.msra.mxu0 0
        %1110 = vmatpush.bf16.msra.mxu0 %v1031
        %1111 = vmatmul.bf16.gmra.mxu0 %v1098
        %v1112 = vpop.f32.mrf.mxu0
        %v1113 = vadd.f32 0.0, %v1112
        %v1114 = vpop.f32.mrf.mxu0
        %v1115 = vadd.f32 0.0, %v1114
        %1116 = vmatmul.bf16.gmra.mxu0 %v1101
        %v1117 = vpop.f32.mrf.mxu0
        %v1118 = vadd.f32 0.0, %v1117
        %v1119 = vpop.f32.mrf.mxu0
        %v1120 = vadd.f32 0.0, %v1119
        %1121 = vdwg.mxu0
        %1122 = vmatpush.bf16.msra.mxu0 0
        %1123 = vmatpush.bf16.msra.mxu0 0
        %1124 = vmatpush.bf16.msra.mxu0 0
        %1125 = vmatpush.bf16.msra.mxu0 0
        %1126 = vmatpush.bf16.msra.mxu0 0
        %1127 = vmatpush.bf16.msra.mxu0 0
        %1128 = vmatpush.bf16.msra.mxu0 0
        %1129 = vmatpush.bf16.msra.mxu0 %v1032
        %1130 = vmatmul.bf16.gmra.mxu0 %v1098
        %v1131 = vpop.f32.mrf.mxu0
        %v1132 = vadd.f32 0.0, %v1131
        %v1133 = vpop.f32.mrf.mxu0
        %v1134 = vadd.f32 0.0, %v1133
        %1135 = vmatmul.bf16.gmra.mxu0 %v1101
        %v1136 = vpop.f32.mrf.mxu0
        %v1137 = vadd.f32 0.0, %v1136
        %v1138 = vpop.f32.mrf.mxu0
        %v1139 = vadd.f32 0.0, %v1138
        %1140 = vdwg.mxu0
        %v1141 = vadd.f32 %v1118, 1e-06
        %v1142 = vadd.f32 %v1137, 1e-06
        %v1143 = vadd.f32 %v1120, 1e-06
        %v1144 = vadd.f32 %v1139, 1e-06
        %v1145 = vrcp.pop %v1141
        %v1146 = vrcp.pop %v1142
        %v1147 = vrcp.pop %v1143
        %v1148 = vrcp.pop %v1144
        %v1149 = vmul.f32 %v1113, %v1145
        %v1150 = vmul.f32 %v1132, %v1146
        %v1151 = vmul.f32 %v1115, %v1147
        %v1152 = vmul.f32 %v1134, %v1148
        %v1153 = vadd.f32 %v1149, %v1023
        %v1154 = vadd.f32 %v1150, %v1024
        %v1155 = vadd.f32 %v1151, %v1025
        %v1156 = vadd.f32 %v1152, %v1026
        %1157 = vst [vmem:[%s455] sm:$0xff] %v1153
        %1158 = vst [vmem:[%s455 + $0x8] sm:$0xff] %v1154
        %1159 = vst [vmem:[%s455 + $0x10] sm:$0xff] %v1155
        %1160 = vst [vmem:[%s455 + $0x18] sm:$0xff] %v1156
        %s1161 = sand.u32 %s215, 1
        %s1162 = scalar_lea.sflag [#allocation4], %s1161
        %s1163 = sand.u32 %s215, 1
        %s1164 = smul.addr %s1163, 32
        %s1165 = scalar_lea.vmem [#allocation3], %s1164
        // Predicated region
        $region87: #{tpu_custom_call.1} parent=81 // pred_check
          %p1166 = pneg %p225
        $region88: #{tpu_custom_call.1} parent=81 // pred_check_branch
          %1168 = sbr.rel (%p1166) target = $region90
        $region89: #{tpu_custom_call.1} parent=81 // pred_region
          %s1169 = smul.u32 2, %s26
          %1171 = vsyncadd %s1162, 0
          %s1172 = smul.addr %s1169, 2
          %s1173 = smul.addr %s25, 8
          %s1174 = sadd.s32 %s1172, %s1173
          %s1175 = smul.addr %s1174, 8
          %s1176 = scalar_lea.hbm %s7, %s1175
          %s1177 = sshll.u32 %s1165, 4
          %s1178 = int_to_ptr.vmem [resolvable:$true] %s1177
          %s1179 = sshll.u32 %s1176, 4
          %s1180 = int_to_ptr.hbm [resolvable:$true] %s1179
          %1185 = dma.vmem_to_hbm [thread:$0]  %s1178, 512, %s1180, %s1162, 256, 256, 16
        $region90: #{tpu_custom_call.1} parent=81 // pred_fallthru
          _
      $region82: #{tpu_custom_call.1} parent=5 // pred_fallthru
        _
      %p1186 = scmp.le.s32.totalorder 2, %s16
      // Predicated region
      $region91: #{tpu_custom_call.1} parent=5 // pred_check
        %p1187 = pneg %p1186
      $region92: #{tpu_custom_call.1} parent=5 // pred_check_branch
        %1189 = sbr.rel (%p1187) target = $region94
      $region93: #{tpu_custom_call.1} parent=5 // pred_region
        %s1190 = ssub.s32 %s16, 2
        // Predicated region
        $region95: #{tpu_custom_call.1} parent=93 // pred_check
          %p1191 = pneg %p231
        $region96: #{tpu_custom_call.1} parent=93 // pred_check_branch
          %1193 = sbr.rel (%p1191) target = $region98
        $region97: #{tpu_custom_call.1} parent=93 // pred_region
          %s1194 = sand.u32 %s216, 1
          %s1195 = scalar_lea.sflag [#allocation4], %s1194
          %s1196 = sand.u32 %s216, 1
          %s1197 = smul.addr %s1196, 32
          %s1198 = scalar_lea.vmem [#allocation3], %s1197
          %1200 = dma.done %s1195, 512
        $region98: #{tpu_custom_call.1} parent=93 // pred_fallthru
          _
      $region94: #{tpu_custom_call.1} parent=5 // pred_fallthru
        _
    $region6: #{tpu_custom_call.1} parent=1 // loop_footer
      %s20 = sadd.s32 1, %s16
    $region7: #{tpu_custom_call.1} parent=1 // loop_footer_branch
      %15 = sbr.rel target = $region3
    $region8: #{tpu_custom_call.1} parent=1 // loop_exit
      _
    %1201 = vsyncpa [#allocation4], 1
    %s1202 = scalar_lea.sflag [#allocation4], 1
    %1203 = vsyncpa %s1202, 1

</llo_original>
